<compile_context>
chip_gen: v5e
topology: v5e:2x2
jax: 0.10.0
libtpu: 0.0.40
codegen_flags: <defaults>
</compile_context>

<pallas_src>
import functools

import jax
import jax.numpy as jnp
from jax import lax
from jax.experimental import pallas as pl
from jax.experimental.pallas import tpu as pltpu

EMB_DIM = 32
LAYERS = (64, 32, 16, 8)

# Row offsets of b0..b3 and the predict bias inside the packed bias slab.
_B_OFFS = []
_off = 0
for _l in LAYERS:
    _B_OFFS.append(_off)
    _off += _l
_BP_OFF = _off                       # predict-head bias row
_B_ROWS = _off + 1                   # total rows in the slab

# dot_general dimension numbers: contract the last axis of both operands
# (keeps the batch dimension of the (tile_b, E) operand as the free/lane axis
# of the matmul result, i.e. activations come out (features, tile_b)).
_CONTRACT_LAST = (((1,), (1,)), ((), ()))


def neucf_kernel(u_ref, i_ref, w0u_ref, w0i_ref, w1_ref, w2_ref, w3_ref,
                 b_ref, wp_ref, out_ref):
    """One batch tile.  Embedding tiles are (tile_b, 2E) bf16; every MLP
    activation is (features, tile_b) with the batch on the lane axis."""
    E = EMB_DIM
    f32 = jnp.float32
    bf16 = jnp.bfloat16

    u = u_ref[...]                                    # (tb, 2E) bf16: [gmf|mlp]
    i = i_ref[...]                                    # (tb, 2E) bf16
    b = b_ref[...]                                    # (sum(L)+1, 1) f32

    # ---- GMF branch: f32 elementwise product of the GMF halves only ----
    gmf = u[:, :E].astype(f32) * i[:, :E].astype(f32)            # (tb, E) f32

    # ---- MLP branch: cat([user_mlp, item_mlp]) as a split bf16 matmul ----
    h = (lax.dot_general(w0u_ref[...], u[:, E:], _CONTRACT_LAST,
                         preferred_element_type=f32)
         + lax.dot_general(w0i_ref[...], i[:, E:], _CONTRACT_LAST,
                           preferred_element_type=f32)
         + b[_B_OFFS[0]:_B_OFFS[0] + LAYERS[0], :])               # (L0, tb) f32
    h = jnp.maximum(h, 0.0).astype(bf16)
    h = jnp.maximum(jnp.dot(w1_ref[...], h, preferred_element_type=f32)
                    + b[_B_OFFS[1]:_B_OFFS[1] + LAYERS[1], :], 0.0).astype(bf16)
    h = jnp.maximum(jnp.dot(w2_ref[...], h, preferred_element_type=f32)
                    + b[_B_OFFS[2]:_B_OFFS[2] + LAYERS[2], :], 0.0).astype(bf16)
    h = jnp.maximum(jnp.dot(w3_ref[...], h, preferred_element_type=f32)
                    + b[_B_OFFS[3]:_B_OFFS[3] + LAYERS[3], :], 0.0)  # (L3, tb) f32

    # ---- predict head on cat([gmf, mlp_out]): two tiny f32 contractions ----
    wp = wp_ref[...]                                  # (1, E + L3) f32
    logit = (lax.dot_general(wp[:, :E], gmf, _CONTRACT_LAST,
                             preferred_element_type=f32)          # (1, tb)
             + jnp.dot(wp[:, E:], h, preferred_element_type=f32)
             + b[_BP_OFF:_BP_OFF + 1, :])                         # (1, tb)
    out_ref[0] = jax.nn.sigmoid(logit)                # block (1, 1, tb), lane-dense


def _round_up(x, m):
    return -(-x // m) * m


def _choose_tile(batch, tile_b):
    """Lane-dense batch tile: multiple of 128, capped at tile_b.  When the
    whole (padded) batch would collapse to a single grid step, split into two
    so the "parallel" axis shards across both v7x TensorCores."""
    t = min(tile_b, _round_up(batch, 128))
    if batch > 128 and t >= batch:
        t = _round_up(-(-batch // 2), 128)
    return max(t, 128)


@functools.partial(jax.jit, static_argnames=("tile_b",))
def neucf_forward(u, i, params, *, tile_b=4096):
    """Embedding gathers (glue) + one Pallas kernel for everything else.

    tile_b is an upper bound on the per-step batch tile (sweep 2048/4096/8192).
    At tile_b=4096 each grid step streams ~1 MiB of bf16 embeddings; with
    double buffering that is ~2 MiB of VMEM — far under every generation's
    limit, including v7x's 64 MiB."""
    (user_table, item_table, w0, b0, w1, b1, w2, b2, w3, b3, wp, bp) = params
    E = EMB_DIM
    B = u.shape[0]

    tb = _choose_tile(B, tile_b)
    num_tiles = -(-B // tb)
    Bp = num_tiles * tb
    if Bp != B:                                      # pad ids; slice output back
        u = jnp.pad(u, (0, Bp - B))
        i = jnp.pad(i, (0, Bp - B))

    # Fused lane-dense gathers (bf16), kept in the gathered (Bp, 2E) layout —
    # no wrapper-side transpose (that was an extra HBM read+write pass).
    ue = user_table[u]                               # (Bp, 2E) bf16
    ie = item_table[i]                               # (Bp, 2E) bf16

    # MLP weights go to bf16 for the native MXU path; biases / head stay f32.
    bf16 = jnp.bfloat16
    w0u = w0[:, :E].astype(bf16)                     # (L0, E)
    w0i = w0[:, E:].astype(bf16)                     # (L0, E)
    w1b, w2b, w3b = w1.astype(bf16), w2.astype(bf16), w3.astype(bf16)
    b_slab = jnp.concatenate([b0, b1, b2, b3, bp]).reshape(-1, 1)  # (121, 1) f32

    emb_spec = pl.BlockSpec((tb, 2 * E), lambda b: (b, 0))

    def const_spec(x):                               # whole (tiny) array resident
        return pl.BlockSpec(x.shape, lambda b: (0, 0))

    in_specs = [emb_spec, emb_spec,
                const_spec(w0u), const_spec(w0i),
                const_spec(w1b), const_spec(w2b), const_spec(w3b),
                const_spec(b_slab), const_spec(wp)]
    out_spec = pl.BlockSpec((1, 1, tb), lambda b: (b, 0, 0))

    out = pl.pallas_call(
        neucf_kernel,
        out_shape=jax.ShapeDtypeStruct((num_tiles, 1, tb), jnp.float32),
        grid=(num_tiles,),
        in_specs=in_specs,
        out_specs=out_spec,
        compiler_params=pltpu.CompilerParams(
            dimension_semantics=("parallel",)),
    )(ue, ie, w0u, w0i, w1b, w2b, w3b, b_slab, wp)

    res = out.reshape(-1)[:B]
    return jnp.squeeze(res)   # matches torch .squeeze(): scalar when B == 1


def init_params(key, n_users, n_items, emb_dim=EMB_DIM, layers=LAYERS):
    """Parameters mirroring the PyTorch module.

    Embedding tables are stored fused (cols [:emb]=GMF, [emb:]=MLP) in bf16;
    Linear weights keep torch (out, in) orientation in f32, biases are 1-D."""
    ks = iter(jax.random.split(key, 2 + 2 * (len(layers) + 1)))

    user_table = jax.random.normal(
        next(ks), (n_users, 2 * emb_dim), jnp.float32).astype(jnp.bfloat16)
    item_table = jax.random.normal(
        next(ks), (n_items, 2 * emb_dim), jnp.float32).astype(jnp.bfloat16)
    params = [user_table, item_table]

    in_size = emb_dim * 2
    for l in layers:
        bound = 1.0 / (in_size ** 0.5)
        w = jax.random.uniform(next(ks), (l, in_size), jnp.float32, -bound, bound)
        b = jax.random.uniform(next(ks), (l,), jnp.float32, -bound, bound)
        params += [w, b]
        in_size = l

    pred_in = emb_dim + layers[-1]
    bound = 1.0 / (pred_in ** 0.5)
    wp = jax.random.uniform(next(ks), (1, pred_in), jnp.float32, -bound, bound)
    bp = jax.random.uniform(next(ks), (1,), jnp.float32, -bound, bound)
    params += [wp, bp]
    return tuple(params)


def neucf_reference(u, i, params):
    """Pure-JAX reference of the PyTorch forward, evaluated at the kernel's
    MLP weight precision (bf16 weights, everything else f32)."""
    (user_table, item_table, w0, b0, w1, b1, w2, b2, w3, b3, wp, bp) = params
    E = EMB_DIM
    f32 = jnp.float32
    U = user_table[u].astype(f32)
    I = item_table[i].astype(f32)
    gmf = U[:, :E] * I[:, :E]
    x = jnp.concatenate([U[:, E:], I[:, E:]], axis=-1)
    for w, b in ((w0, b0), (w1, b1), (w2, b2), (w3, b3)):
        wb = w.astype(jnp.bfloat16).astype(f32)
        x = jnp.maximum(x @ wb.T + b, 0.0)
    concat = jnp.concatenate([gmf, x], axis=-1)
    return jnp.squeeze(jax.nn.sigmoid(concat @ wp.T + bp))


if __name__ == "__main__":
    key = jax.random.PRNGKey(0)
    kp, ku, ki = jax.random.split(key, 3)

    # batch not a multiple of 128: exercises padding AND the 2-tile split path.
    n_users, n_items, batch = 64, 96, 384
    params = init_params(kp, n_users, n_items)

    u = jax.random.randint(ku, (batch,), 0, n_users, dtype=jnp.int32)
    i = jax.random.randint(ki, (batch,), 0, n_items, dtype=jnp.int32)

    out = neucf_forward(u, i, params)
    out = jax.block_until_ready(out)

    ref = neucf_reference(u, i, params)
    assert out.shape == (batch,)
    assert jnp.allclose(out, ref, atol=2e-3, rtol=2e-3), (
        float(jnp.max(jnp.abs(out - ref))))

    print("KERNEL_OK")
</pallas_src>

<mosaic_0001>
module attributes {stable_mosaic.version = 11 : i64} {
  func.func @neucf_kernel(%arg0: i32, %arg1: memref<256x64xbf16, #tpu.memory_space<vmem>>, %arg2: memref<256x64xbf16, #tpu.memory_space<vmem>>, %arg3: memref<64x32xbf16, #tpu.memory_space<vmem>>, %arg4: memref<64x32xbf16, #tpu.memory_space<vmem>>, %arg5: memref<32x64xbf16, #tpu.memory_space<vmem>>, %arg6: memref<16x32xbf16, #tpu.memory_space<vmem>>, %arg7: memref<8x16xbf16, #tpu.memory_space<vmem>>, %arg8: memref<121x1xf32, #tpu.memory_space<vmem>>, %arg9: memref<1x40xf32, #tpu.memory_space<vmem>>, %arg10: memref<1x1x256xf32, #tpu.memory_space<vmem>>) attributes {dimension_semantics = [#tpu.dimension_semantics<parallel>], iteration_bounds = array<i64: 2>, scalar_prefetch = 0 : i64, scratch_operands = 0 : i64, tpu.core_type = #tpu.core_type<tc>, window_params = [{transform_indices = @transform_0, window_bounds = array<i64: 256, 64>}, {transform_indices = @transform_1, window_bounds = array<i64: 256, 64>}, {pipeline_mode = #tpu.pipeline_mode<synchronous>, transform_indices = @transform_2, window_bounds = array<i64: 64, 32>}, {pipeline_mode = #tpu.pipeline_mode<synchronous>, transform_indices = @transform_3, window_bounds = array<i64: 64, 32>}, {pipeline_mode = #tpu.pipeline_mode<synchronous>, transform_indices = @transform_4, window_bounds = array<i64: 32, 64>}, {pipeline_mode = #tpu.pipeline_mode<synchronous>, transform_indices = @transform_5, window_bounds = array<i64: 16, 32>}, {pipeline_mode = #tpu.pipeline_mode<synchronous>, transform_indices = @transform_6, window_bounds = array<i64: 8, 16>}, {pipeline_mode = #tpu.pipeline_mode<synchronous>, transform_indices = @transform_7, window_bounds = array<i64: 121, 1>}, {pipeline_mode = #tpu.pipeline_mode<synchronous>, transform_indices = @transform_8, window_bounds = array<i64: 1, 40>}, {transform_indices = @transform_9, window_bounds = array<i64: 1, 1, 256>}]} {
    %c0 = arith.constant 0 : index
    %c0_0 = arith.constant 0 : index
    %0 = vector.load %arg1[%c0, %c0_0] : memref<256x64xbf16, #tpu.memory_space<vmem>>, vector<256x64xbf16>
    %c0_1 = arith.constant 0 : index
    %c0_2 = arith.constant 0 : index
    %1 = vector.load %arg2[%c0_1, %c0_2] : memref<256x64xbf16, #tpu.memory_space<vmem>>, vector<256x64xbf16>
    %c0_3 = arith.constant 0 : index
    %c0_4 = arith.constant 0 : index
    %2 = vector.load %arg8[%c0_3, %c0_4] : memref<121x1xf32, #tpu.memory_space<vmem>>, vector<121x1xf32>
    %3 = vector.extract_strided_slice %0 {offsets = [0, 0], sizes = [256, 32], strides = [1, 1]} : vector<256x64xbf16> to vector<256x32xbf16>
    %4 = arith.extf %3 : vector<256x32xbf16> to vector<256x32xf32>
    %5 = vector.extract_strided_slice %1 {offsets = [0, 0], sizes = [256, 32], strides = [1, 1]} : vector<256x64xbf16> to vector<256x32xbf16>
    %6 = arith.extf %5 : vector<256x32xbf16> to vector<256x32xf32>
    %7 = arith.mulf %4, %6 : vector<256x32xf32>
    %c0_5 = arith.constant 0 : index
    %c0_6 = arith.constant 0 : index
    %8 = vector.load %arg3[%c0_5, %c0_6] : memref<64x32xbf16, #tpu.memory_space<vmem>>, vector<64x32xbf16>
    %9 = vector.extract_strided_slice %0 {offsets = [0, 32], sizes = [256, 32], strides = [1, 1]} : vector<256x64xbf16> to vector<256x32xbf16>
    %cst = arith.constant dense<0.000000e+00> : vector<64x256xf32>
    %10 = tpu.matmul %8, %9, %cst {dimension_numbers = #tpu.dot_dimension_numbers<[1], [1], [0], [0], [0, 0, 1, 0], [], []>} : vector<64x32xbf16>, vector<256x32xbf16>, vector<64x256xf32> -> vector<64x256xf32>
    %c0_7 = arith.constant 0 : index
    %c0_8 = arith.constant 0 : index
    %11 = vector.load %arg4[%c0_7, %c0_8] : memref<64x32xbf16, #tpu.memory_space<vmem>>, vector<64x32xbf16>
    %12 = vector.extract_strided_slice %1 {offsets = [0, 32], sizes = [256, 32], strides = [1, 1]} : vector<256x64xbf16> to vector<256x32xbf16>
    %cst_9 = arith.constant dense<0.000000e+00> : vector<64x256xf32>
    %13 = tpu.matmul %11, %12, %cst_9 {dimension_numbers = #tpu.dot_dimension_numbers<[1], [1], [0], [0], [0, 0, 1, 0], [], []>} : vector<64x32xbf16>, vector<256x32xbf16>, vector<64x256xf32> -> vector<64x256xf32>
    %14 = arith.addf %10, %13 : vector<64x256xf32>
    %15 = vector.extract_strided_slice %2 {offsets = [0, 0], sizes = [64, 1], strides = [1, 1]} : vector<121x1xf32> to vector<64x1xf32>
    %16 = vector.broadcast %15 : vector<64x1xf32> to vector<64x256xf32>
    %17 = arith.addf %14, %16 : vector<64x256xf32>
    %cst_10 = arith.constant 0.000000e+00 : f32
    %18 = vector.broadcast %cst_10 : f32 to vector<64x256xf32>
    %19 = arith.maximumf %17, %18 : vector<64x256xf32>
    %20 = arith.truncf %19 : vector<64x256xf32> to vector<64x256xbf16>
    %c0_11 = arith.constant 0 : index
    %c0_12 = arith.constant 0 : index
    %21 = vector.load %arg5[%c0_11, %c0_12] : memref<32x64xbf16, #tpu.memory_space<vmem>>, vector<32x64xbf16>
    %cst_13 = arith.constant dense<0.000000e+00> : vector<32x256xf32>
    %22 = tpu.matmul %21, %20, %cst_13 {dimension_numbers = #tpu.dot_dimension_numbers<[1], [0], [0], [1], [0, 0, 1, 1], [], []>} : vector<32x64xbf16>, vector<64x256xbf16>, vector<32x256xf32> -> vector<32x256xf32>
    %23 = vector.extract_strided_slice %2 {offsets = [64, 0], sizes = [32, 1], strides = [1, 1]} : vector<121x1xf32> to vector<32x1xf32>
    %24 = vector.broadcast %23 : vector<32x1xf32> to vector<32x256xf32>
    %25 = arith.addf %22, %24 : vector<32x256xf32>
    %cst_14 = arith.constant 0.000000e+00 : f32
    %26 = vector.broadcast %cst_14 : f32 to vector<32x256xf32>
    %27 = arith.maximumf %25, %26 : vector<32x256xf32>
    %28 = arith.truncf %27 : vector<32x256xf32> to vector<32x256xbf16>
    %c0_15 = arith.constant 0 : index
    %c0_16 = arith.constant 0 : index
    %29 = vector.load %arg6[%c0_15, %c0_16] : memref<16x32xbf16, #tpu.memory_space<vmem>>, vector<16x32xbf16>
    %cst_17 = arith.constant dense<0.000000e+00> : vector<16x256xf32>
    %30 = tpu.matmul %29, %28, %cst_17 {dimension_numbers = #tpu.dot_dimension_numbers<[1], [0], [0], [1], [0, 0, 1, 1], [], []>} : vector<16x32xbf16>, vector<32x256xbf16>, vector<16x256xf32> -> vector<16x256xf32>
    %31 = vector.extract_strided_slice %2 {offsets = [96, 0], sizes = [16, 1], strides = [1, 1]} : vector<121x1xf32> to vector<16x1xf32>
    %32 = vector.broadcast %31 : vector<16x1xf32> to vector<16x256xf32>
    %33 = arith.addf %30, %32 : vector<16x256xf32>
    %cst_18 = arith.constant 0.000000e+00 : f32
    %34 = vector.broadcast %cst_18 : f32 to vector<16x256xf32>
    %35 = arith.maximumf %33, %34 : vector<16x256xf32>
    %36 = arith.truncf %35 : vector<16x256xf32> to vector<16x256xbf16>
    %c0_19 = arith.constant 0 : index
    %c0_20 = arith.constant 0 : index
    %37 = vector.load %arg7[%c0_19, %c0_20] : memref<8x16xbf16, #tpu.memory_space<vmem>>, vector<8x16xbf16>
    %cst_21 = arith.constant dense<0.000000e+00> : vector<8x256xf32>
    %38 = tpu.matmul %37, %36, %cst_21 {dimension_numbers = #tpu.dot_dimension_numbers<[1], [0], [0], [1], [0, 0, 1, 1], [], []>} : vector<8x16xbf16>, vector<16x256xbf16>, vector<8x256xf32> -> vector<8x256xf32>
    %39 = vector.extract_strided_slice %2 {offsets = [112, 0], sizes = [8, 1], strides = [1, 1]} : vector<121x1xf32> to vector<8x1xf32>
    %40 = vector.broadcast %39 : vector<8x1xf32> to vector<8x256xf32>
    %41 = arith.addf %38, %40 : vector<8x256xf32>
    %cst_22 = arith.constant 0.000000e+00 : f32
    %42 = vector.broadcast %cst_22 : f32 to vector<8x256xf32>
    %43 = arith.maximumf %41, %42 : vector<8x256xf32>
    %c0_23 = arith.constant 0 : index
    %c0_24 = arith.constant 0 : index
    %44 = vector.load %arg9[%c0_23, %c0_24] : memref<1x40xf32, #tpu.memory_space<vmem>>, vector<1x40xf32>
    %45 = vector.extract_strided_slice %44 {offsets = [0, 0], sizes = [1, 32], strides = [1, 1]} : vector<1x40xf32> to vector<1x32xf32>
    %cst_25 = arith.constant dense<0.000000e+00> : vector<1x256xf32>
    %46 = tpu.matmul %45, %7, %cst_25 {dimension_numbers = #tpu.dot_dimension_numbers<[1], [1], [0], [0], [0, 0, 1, 0], [], []>} : vector<1x32xf32>, vector<256x32xf32>, vector<1x256xf32> -> vector<1x256xf32>
    %47 = vector.extract_strided_slice %44 {offsets = [0, 32], sizes = [1, 8], strides = [1, 1]} : vector<1x40xf32> to vector<1x8xf32>
    %cst_26 = arith.constant dense<0.000000e+00> : vector<1x256xf32>
    %48 = tpu.matmul %47, %43, %cst_26 {dimension_numbers = #tpu.dot_dimension_numbers<[1], [0], [0], [1], [0, 0, 1, 1], [], []>} : vector<1x8xf32>, vector<8x256xf32>, vector<1x256xf32> -> vector<1x256xf32>
    %49 = arith.addf %46, %48 : vector<1x256xf32>
    %50 = vector.extract_strided_slice %2 {offsets = [120, 0], sizes = [1, 1], strides = [1, 1]} : vector<121x1xf32> to vector<1x1xf32>
    %51 = vector.broadcast %50 : vector<1x1xf32> to vector<1x256xf32>
    %52 = arith.addf %49, %51 : vector<1x256xf32>
    %53 = arith.negf %52 : vector<1x256xf32>
    %54 = math.exp %53 : vector<1x256xf32>
    %cst_27 = arith.constant 1.000000e+00 : f32
    %55 = vector.broadcast %cst_27 : f32 to vector<1x256xf32>
    %56 = arith.addf %55, %54 : vector<1x256xf32>
    %57 = arith.divf %55, %56 : vector<1x256xf32>
    %c0_28 = arith.constant 0 : index
    %c0_29 = arith.constant 0 : index
    %c0_30 = arith.constant 0 : index
    %58 = vector.load %arg10[%c0_28, %c0_29, %c0_30] : memref<1x1x256xf32, #tpu.memory_space<vmem>>, vector<1x1x256xf32>
    %59 = vector.shape_cast %58 : vector<1x1x256xf32> to vector<1x256xf32>
    %60 = vector.shape_cast %57 : vector<1x256xf32> to vector<1x1x256xf32>
    tpu.vector_store %arg10[%c0_28, %c0_29, %c0_30], %60 {strides = array<i32>} : memref<1x1x256xf32, #tpu.memory_space<vmem>>, vector<1x1x256xf32>,
    return
  }
  func.func @transform_0(%arg0: i32) -> (i32, i32) {
    %c0_i32 = arith.constant 0 : i32
    %c0_i32_0 = arith.constant 0 : i32
    return %arg0, %c0_i32 : i32, i32
  }
  func.func @transform_1(%arg0: i32) -> (i32, i32) {
    %c0_i32 = arith.constant 0 : i32
    %c0_i32_0 = arith.constant 0 : i32
    return %arg0, %c0_i32 : i32, i32
  }
  func.func @transform_2(%arg0: i32) -> (i32, i32) {
    %c0_i32 = arith.constant 0 : i32
    %c0_i32_0 = arith.constant 0 : i32
    %c0_i32_1 = arith.constant 0 : i32
    return %c0_i32, %c0_i32_0 : i32, i32
  }
  func.func @transform_3(%arg0: i32) -> (i32, i32) {
    %c0_i32 = arith.constant 0 : i32
    %c0_i32_0 = arith.constant 0 : i32
    %c0_i32_1 = arith.constant 0 : i32
    return %c0_i32, %c0_i32_0 : i32, i32
  }
  func.func @transform_4(%arg0: i32) -> (i32, i32) {
    %c0_i32 = arith.constant 0 : i32
    %c0_i32_0 = arith.constant 0 : i32
    %c0_i32_1 = arith.constant 0 : i32
    return %c0_i32, %c0_i32_0 : i32, i32
  }
  func.func @transform_5(%arg0: i32) -> (i32, i32) {
    %c0_i32 = arith.constant 0 : i32
    %c0_i32_0 = arith.constant 0 : i32
    %c0_i32_1 = arith.constant 0 : i32
    return %c0_i32, %c0_i32_0 : i32, i32
  }
  func.func @transform_6(%arg0: i32) -> (i32, i32) {
    %c0_i32 = arith.constant 0 : i32
    %c0_i32_0 = arith.constant 0 : i32
    %c0_i32_1 = arith.constant 0 : i32
    return %c0_i32, %c0_i32_0 : i32, i32
  }
  func.func @transform_7(%arg0: i32) -> (i32, i32) {
    %c0_i32 = arith.constant 0 : i32
    %c0_i32_0 = arith.constant 0 : i32
    %c0_i32_1 = arith.constant 0 : i32
    return %c0_i32, %c0_i32_0 : i32, i32
  }
  func.func @transform_8(%arg0: i32) -> (i32, i32) {
    %c0_i32 = arith.constant 0 : i32
    %c0_i32_0 = arith.constant 0 : i32
    %c0_i32_1 = arith.constant 0 : i32
    return %c0_i32, %c0_i32_0 : i32, i32
  }
  func.func @transform_9(%arg0: i32) -> (i32, i32, i32) {
    %c0_i32 = arith.constant 0 : i32
    %c0_i32_0 = arith.constant 0 : i32
    %c0_i32_1 = arith.constant 0 : i32
    return %arg0, %c0_i32, %c0_i32_0 : i32, i32, i32
  }
}

</mosaic_0001>

<llo_original>
// kernel: neucf_forward.1
$region0: #{neucf_forward.1}
  #allocation0 [shape = 'u32[]', space=smem, size = 0x4, offset = 0x4, fixed_abs, tag = 'smem constant byte address 0x4 - core index']
  #allocation1 [shape = 'u32[72,128]{1,0:T(1,128)}', space=vmem, size = 0x9000, scoped, tag = 'internal scratch']
  %s0 = inlined_call_operand.vmem [shape: bf16[512,64], index: 0, kind: input, shape index: {}]
  %s1 = inlined_call_operand.vmem [shape: bf16[512,64], index: 1, kind: input, shape index: {}]
  %s2 = inlined_call_operand.vmem [shape: bf16[64,32], index: 2, kind: input, shape index: {}]
  %s3 = inlined_call_operand.vmem [shape: bf16[64,32], index: 3, kind: input, shape index: {}]
  %s4 = inlined_call_operand.vmem [shape: bf16[32,64], index: 4, kind: input, shape index: {}]
  %s5 = inlined_call_operand.vmem [shape: bf16[16,32], index: 5, kind: input, shape index: {}]
  %s6 = inlined_call_operand.vmem [shape: bf16[8,16], index: 6, kind: input, shape index: {}]
  %s7 = inlined_call_operand.vmem [shape: f32[121,1], index: 7, kind: input, shape index: {}]
  %s8 = inlined_call_operand.vmem [shape: f32[1,40], index: 8, kind: input, shape index: {}]
  %s9 = inlined_call_operand.hbm [shape: f32[2,1,256], index: 9, kind: output, shape index: {}]
  %s10 = sld [smem:[#allocation0]]
  $region69: #{neucf_forward.1} parent=0
    _
  %s12 = ssub.s32 1, %s10
  %s13 = scalar_select 0, %s12, %s10
  $region1: #{neucf_forward.1} parent=0
    #allocation2 [shape = 'u8[2048]{0}', space=vmem, size = 0x800, scoped, tag = 'output window, operand 0']
    #allocation3 [shape = 's32[2]{0}', space=sflag, size = 0x8, scoped, tag = 'scoped memory for neucf_forward.1']
    %14 = vsyncpa [#allocation3], 0
    %s15 = scalar_lea.sflag [#allocation3], 1
    %16 = vsyncpa %s15, 0
    loop: start=0, step=1, limit=4
    $region2: #{neucf_forward.1} parent=1 // loop_pre_header
      _
    $region3: #{neucf_forward.1} parent=1 // loop_header
      %s18 = sphi 0, %s22
      %p19 = scmp.ge.s32.totalorder %s18, 4
      %s28 = sphi 0, %s30
      %s31 = sphi 0, %s28
      %s32 = sphi 0, %s31
      %s48 = sphi 0, %s32
      %s54 = sphi 0, %s56
      %s57 = sphi 0, %s54
      %s58 = sphi 0, %s57
      %s74 = sphi 0, %s58
      %s78 = sphi 0, %s78
      %s80 = sphi 0, %s78
      %s81 = sphi 0, %s80
      %s95 = sphi 0, %s81
      %s99 = sphi 0, %s99
      %s101 = sphi 0, %s99
      %s102 = sphi 0, %s101
      %s116 = sphi 0, %s102
      %s120 = sphi 0, %s120
      %s122 = sphi 0, %s120
      %s123 = sphi 0, %s122
      %s137 = sphi 0, %s123
      %s141 = sphi 0, %s141
      %s143 = sphi 0, %s141
      %s144 = sphi 0, %s143
      %s158 = sphi 0, %s144
      %s162 = sphi 0, %s162
      %s164 = sphi 0, %s162
      %s165 = sphi 0, %s164
      %s179 = sphi 0, %s165
      %s183 = sphi 0, %s183
      %s185 = sphi 0, %s183
      %s186 = sphi 0, %s185
      %s200 = sphi 0, %s186
      %s204 = sphi 0, %s204
      %s206 = sphi 0, %s204
      %s207 = sphi 0, %s206
      %s221 = sphi 0, %s207
      %s227 = sphi 0, %s229
      %s230 = sphi 0, %s227
      %s231 = sphi 0, %s230
      %s247 = sphi 0, %s231
    $region4: #{neucf_forward.1} parent=1 // loop_header_branch
      %21 = sbr.rel (%p19) target = $region8
    $region5: #{neucf_forward.1} parent=1 // loop_body
      %s23 = ssub.s32 %s18, 1
      %s24 = ssub.s32 %s18, 2
      %s25 = sadd.s32 %s18, 1
      %s26 = ssub.s32 %s18, %s25
      %p27 = scmp.eq.s32.totalorder %s26, 0
      %s29 = sadd.s32 %s28, 1
      %s30 = scalar_select %p27, %s28, %s29
      %p33 = pneg %p27
      %p34 = scmp.eq.s32.totalorder %s18, 1
      %p35 = por %p33, %p34
      %p36 = scmp.ne.s32.totalorder %s28, %s31
      %p37 = scmp.eq.s32.totalorder %s18, 0
      %p38 = por %p36, %p37
      %p39 = scmp.ne.s32.totalorder %s28, %s31
      %p40 = scmp.eq.s32.totalorder %s23, 1
      %p41 = por %p39, %p40
      %p42 = scmp.ne.s32.totalorder %s31, %s32
      %p43 = scmp.eq.s32.totalorder %s23, 0
      %p44 = por %p42, %p43
      %p45 = scmp.ne.s32.totalorder %s31, %s32
      %p46 = scmp.eq.s32.totalorder %s24, 1
      %p47 = por %p45, %p46
      %p49 = scmp.ne.s32.totalorder %s32, %s48
      %p50 = scmp.eq.s32.totalorder %s24, 0
      %p51 = por %p49, %p50
      %s52 = ssub.s32 %s18, %s25
      %p53 = scmp.eq.s32.totalorder %s52, 0
      %s55 = sadd.s32 %s54, 1
      %s56 = scalar_select %p53, %s54, %s55
      %p59 = pneg %p53
      %p60 = scmp.eq.s32.totalorder %s18, 1
      %p61 = por %p59, %p60
      %p62 = scmp.ne.s32.totalorder %s54, %s57
      %p63 = scmp.eq.s32.totalorder %s18, 0
      %p64 = por %p62, %p63
      %p65 = scmp.ne.s32.totalorder %s54, %s57
      %p66 = scmp.eq.s32.totalorder %s23, 1
      %p67 = por %p65, %p66
      %p68 = scmp.ne.s32.totalorder %s57, %s58
      %p69 = scmp.eq.s32.totalorder %s23, 0
      %p70 = por %p68, %p69
      %p71 = scmp.ne.s32.totalorder %s57, %s58
      %p72 = scmp.eq.s32.totalorder %s24, 1
      %p73 = por %p71, %p72
      %p75 = scmp.ne.s32.totalorder %s58, %s74
      %p76 = scmp.eq.s32.totalorder %s24, 0
      %p77 = por %p75, %p76
      %s79 = sadd.s32 %s78, 1
      %p82 = scmp.eq.s32.totalorder %s18, 1
      %p83 = scmp.ne.s32.totalorder %s78, %s80
      %p84 = scmp.eq.s32.totalorder %s18, 0
      %p85 = por %p83, %p84
      %p86 = scmp.ne.s32.totalorder %s78, %s80
      %p87 = scmp.eq.s32.totalorder %s23, 1
      %p88 = por %p86, %p87
      %p89 = scmp.ne.s32.totalorder %s80, %s81
      %p90 = scmp.eq.s32.totalorder %s23, 0
      %p91 = por %p89, %p90
      %p92 = scmp.ne.s32.totalorder %s80, %s81
      %p93 = scmp.eq.s32.totalorder %s24, 1
      %p94 = por %p92, %p93
      %p96 = scmp.ne.s32.totalorder %s81, %s95
      %p97 = scmp.eq.s32.totalorder %s24, 0
      %p98 = por %p96, %p97
      %s100 = sadd.s32 %s99, 1
      %p103 = scmp.eq.s32.totalorder %s18, 1
      %p104 = scmp.ne.s32.totalorder %s99, %s101
      %p105 = scmp.eq.s32.totalorder %s18, 0
      %p106 = por %p104, %p105
      %p107 = scmp.ne.s32.totalorder %s99, %s101
      %p108 = scmp.eq.s32.totalorder %s23, 1
      %p109 = por %p107, %p108
      %p110 = scmp.ne.s32.totalorder %s101, %s102
      %p111 = scmp.eq.s32.totalorder %s23, 0
      %p112 = por %p110, %p111
      %p113 = scmp.ne.s32.totalorder %s101, %s102
      %p114 = scmp.eq.s32.totalorder %s24, 1
      %p115 = por %p113, %p114
      %p117 = scmp.ne.s32.totalorder %s102, %s116
      %p118 = scmp.eq.s32.totalorder %s24, 0
      %p119 = por %p117, %p118
      %s121 = sadd.s32 %s120, 1
      %p124 = scmp.eq.s32.totalorder %s18, 1
      %p125 = scmp.ne.s32.totalorder %s120, %s122
      %p126 = scmp.eq.s32.totalorder %s18, 0
      %p127 = por %p125, %p126
      %p128 = scmp.ne.s32.totalorder %s120, %s122
      %p129 = scmp.eq.s32.totalorder %s23, 1
      %p130 = por %p128, %p129
      %p131 = scmp.ne.s32.totalorder %s122, %s123
      %p132 = scmp.eq.s32.totalorder %s23, 0
      %p133 = por %p131, %p132
      %p134 = scmp.ne.s32.totalorder %s122, %s123
      %p135 = scmp.eq.s32.totalorder %s24, 1
      %p136 = por %p134, %p135
      %p138 = scmp.ne.s32.totalorder %s123, %s137
      %p139 = scmp.eq.s32.totalorder %s24, 0
      %p140 = por %p138, %p139
      %s142 = sadd.s32 %s141, 1
      %p145 = scmp.eq.s32.totalorder %s18, 1
      %p146 = scmp.ne.s32.totalorder %s141, %s143
      %p147 = scmp.eq.s32.totalorder %s18, 0
      %p148 = por %p146, %p147
      %p149 = scmp.ne.s32.totalorder %s141, %s143
      %p150 = scmp.eq.s32.totalorder %s23, 1
      %p151 = por %p149, %p150
      %p152 = scmp.ne.s32.totalorder %s143, %s144
      %p153 = scmp.eq.s32.totalorder %s23, 0
      %p154 = por %p152, %p153
      %p155 = scmp.ne.s32.totalorder %s143, %s144
      %p156 = scmp.eq.s32.totalorder %s24, 1
      %p157 = por %p155, %p156
      %p159 = scmp.ne.s32.totalorder %s144, %s158
      %p160 = scmp.eq.s32.totalorder %s24, 0
      %p161 = por %p159, %p160
      %s163 = sadd.s32 %s162, 1
      %p166 = scmp.eq.s32.totalorder %s18, 1
      %p167 = scmp.ne.s32.totalorder %s162, %s164
      %p168 = scmp.eq.s32.totalorder %s18, 0
      %p169 = por %p167, %p168
      %p170 = scmp.ne.s32.totalorder %s162, %s164
      %p171 = scmp.eq.s32.totalorder %s23, 1
      %p172 = por %p170, %p171
      %p173 = scmp.ne.s32.totalorder %s164, %s165
      %p174 = scmp.eq.s32.totalorder %s23, 0
      %p175 = por %p173, %p174
      %p176 = scmp.ne.s32.totalorder %s164, %s165
      %p177 = scmp.eq.s32.totalorder %s24, 1
      %p178 = por %p176, %p177
      %p180 = scmp.ne.s32.totalorder %s165, %s179
      %p181 = scmp.eq.s32.totalorder %s24, 0
      %p182 = por %p180, %p181
      %s184 = sadd.s32 %s183, 1
      %p187 = scmp.eq.s32.totalorder %s18, 1
      %p188 = scmp.ne.s32.totalorder %s183, %s185
      %p189 = scmp.eq.s32.totalorder %s18, 0
      %p190 = por %p188, %p189
      %p191 = scmp.ne.s32.totalorder %s183, %s185
      %p192 = scmp.eq.s32.totalorder %s23, 1
      %p193 = por %p191, %p192
      %p194 = scmp.ne.s32.totalorder %s185, %s186
      %p195 = scmp.eq.s32.totalorder %s23, 0
      %p196 = por %p194, %p195
      %p197 = scmp.ne.s32.totalorder %s185, %s186
      %p198 = scmp.eq.s32.totalorder %s24, 1
      %p199 = por %p197, %p198
      %p201 = scmp.ne.s32.totalorder %s186, %s200
      %p202 = scmp.eq.s32.totalorder %s24, 0
      %p203 = por %p201, %p202
      %s205 = sadd.s32 %s204, 1
      %p208 = scmp.eq.s32.totalorder %s18, 1
      %p209 = scmp.ne.s32.totalorder %s204, %s206
      %p210 = scmp.eq.s32.totalorder %s18, 0
      %p211 = por %p209, %p210
      %p212 = scmp.ne.s32.totalorder %s204, %s206
      %p213 = scmp.eq.s32.totalorder %s23, 1
      %p214 = por %p212, %p213
      %p215 = scmp.ne.s32.totalorder %s206, %s207
      %p216 = scmp.eq.s32.totalorder %s23, 0
      %p217 = por %p215, %p216
      %p218 = scmp.ne.s32.totalorder %s206, %s207
      %p219 = scmp.eq.s32.totalorder %s24, 1
      %p220 = por %p218, %p219
      %p222 = scmp.ne.s32.totalorder %s207, %s221
      %p223 = scmp.eq.s32.totalorder %s24, 0
      %p224 = por %p222, %p223
      %s225 = ssub.s32 %s18, %s25
      %p226 = scmp.eq.s32.totalorder %s225, 0
      %s228 = sadd.s32 %s227, 1
      %s229 = scalar_select %p226, %s227, %s228
      %p232 = pneg %p226
      %p233 = scmp.eq.s32.totalorder %s18, 1
      %p234 = por %p232, %p233
      %p235 = scmp.ne.s32.totalorder %s227, %s230
      %p236 = scmp.eq.s32.totalorder %s18, 0
      %p237 = por %p235, %p236
      %p238 = scmp.ne.s32.totalorder %s227, %s230
      %p239 = scmp.eq.s32.totalorder %s23, 1
      %p240 = por %p238, %p239
      %p241 = scmp.ne.s32.totalorder %s230, %s231
      %p242 = scmp.eq.s32.totalorder %s23, 0
      %p243 = por %p241, %p242
      %p244 = scmp.ne.s32.totalorder %s230, %s231
      %p245 = scmp.eq.s32.totalorder %s24, 1
      %p246 = por %p244, %p245
      %p248 = scmp.ne.s32.totalorder %s231, %s247
      %p249 = scmp.eq.s32.totalorder %s24, 0
      %p250 = por %p248, %p249
      %p251 = scmp.le.s32.totalorder 1, %s18
      %p252 = scmp.lt.s32.totalorder %s18, 3
      %p253 = pnand %p251, %p252
      %p254 = pneg %p253
      // Predicated region
      $region9: #{neucf_forward.1} parent=5 // pred_check
        _
      $region10: #{neucf_forward.1} parent=5 // pred_check_branch
        %256 = sbr.rel (%p253) target = $region12
      $region11: #{neucf_forward.1} parent=5 // pred_region
        %s257 = ssub.s32 %s18, 1
        // Predicated region
        $region13: #{neucf_forward.1} parent=11 // pred_check
          %p258 = pneg %p91
        $region14: #{neucf_forward.1} parent=11 // pred_check_branch
          %260 = sbr.rel (%p258) target = $region16
        $region15: #{neucf_forward.1} parent=11 // pred_region
          _
        $region16: #{neucf_forward.1} parent=11 // pred_fallthru
          _
        // Predicated region
        $region17: #{neucf_forward.1} parent=11 // pred_check
          %p261 = pneg %p112
        $region18: #{neucf_forward.1} parent=11 // pred_check_branch
          %263 = sbr.rel (%p261) target = $region20
        $region19: #{neucf_forward.1} parent=11 // pred_region
          _
        $region20: #{neucf_forward.1} parent=11 // pred_fallthru
          _
        // Predicated region
        $region21: #{neucf_forward.1} parent=11 // pred_check
          %p264 = pneg %p133
        $region22: #{neucf_forward.1} parent=11 // pred_check_branch
          %266 = sbr.rel (%p264) target = $region24
        $region23: #{neucf_forward.1} parent=11 // pred_region
          _
        $region24: #{neucf_forward.1} parent=11 // pred_fallthru
          _
        // Predicated region
        $region25: #{neucf_forward.1} parent=11 // pred_check
          %p267 = pneg %p154
        $region26: #{neucf_forward.1} parent=11 // pred_check_branch
          %269 = sbr.rel (%p267) target = $region28
        $region27: #{neucf_forward.1} parent=11 // pred_region
          _
        $region28: #{neucf_forward.1} parent=11 // pred_fallthru
          _
        // Predicated region
        $region29: #{neucf_forward.1} parent=11 // pred_check
          %p270 = pneg %p175
        $region30: #{neucf_forward.1} parent=11 // pred_check_branch
          %272 = sbr.rel (%p270) target = $region32
        $region31: #{neucf_forward.1} parent=11 // pred_region
          _
        $region32: #{neucf_forward.1} parent=11 // pred_fallthru
          _
        // Predicated region
        $region33: #{neucf_forward.1} parent=11 // pred_check
          %p273 = pneg %p196
        $region34: #{neucf_forward.1} parent=11 // pred_check_branch
          %275 = sbr.rel (%p273) target = $region36
        $region35: #{neucf_forward.1} parent=11 // pred_region
          _
        $region36: #{neucf_forward.1} parent=11 // pred_fallthru
          _
        // Predicated region
        $region37: #{neucf_forward.1} parent=11 // pred_check
          %p276 = pneg %p217
        $region38: #{neucf_forward.1} parent=11 // pred_check_branch
          %278 = sbr.rel (%p276) target = $region40
        $region39: #{neucf_forward.1} parent=11 // pred_region
          _
        $region40: #{neucf_forward.1} parent=11 // pred_fallthru
          _
      $region12: #{neucf_forward.1} parent=5 // pred_fallthru
        _
      %p279 = scmp.lt.s32.totalorder %s18, 2
      // Predicated region
      $region41: #{neucf_forward.1} parent=5 // pred_check
        %p280 = pneg %p279
      $region42: #{neucf_forward.1} parent=5 // pred_check_branch
        %282 = sbr.rel (%p280) target = $region44
      $region43: #{neucf_forward.1} parent=5 // pred_region
        // Predicated region
        $region45: #{neucf_forward.1} parent=43 // pred_check
          %p283 = pneg %p38
        $region46: #{neucf_forward.1} parent=43 // pred_check_branch
          %285 = sbr.rel (%p283) target = $region48
        $region47: #{neucf_forward.1} parent=43 // pred_region
          %s286 = smul.u32 32, %s18
          %p287 = scmp.lt.s32.totalorder %s286, 63
          %s288 = scalar_select %p287, %s286, 63
          %s289 = smul.addr %s288, 4
          %s290 = scalar_lea.vmem %s0, %s289
          %s291 = smul.u32 32, %s18
        $region48: #{neucf_forward.1} parent=43 // pred_fallthru
          _
        // Predicated region
        $region49: #{neucf_forward.1} parent=43 // pred_check
          %p292 = pneg %p64
        $region50: #{neucf_forward.1} parent=43 // pred_check_branch
          %294 = sbr.rel (%p292) target = $region52
        $region51: #{neucf_forward.1} parent=43 // pred_region
          %s295 = smul.u32 32, %s18
          %p296 = scmp.lt.s32.totalorder %s295, 63
          %s297 = scalar_select %p296, %s295, 63
          %s298 = smul.addr %s297, 4
          %s299 = scalar_lea.vmem %s1, %s298
          %s300 = smul.u32 32, %s18
        $region52: #{neucf_forward.1} parent=43 // pred_fallthru
          _
      $region44: #{neucf_forward.1} parent=5 // pred_fallthru
        _
      %p301 = scmp.le.s32.totalorder 1, %s18
      %p302 = scmp.lt.s32.totalorder %s18, 3
      %p303 = pnand %p301, %p302
      %p304 = pneg %p303
      // Predicated region
      $region53: #{neucf_forward.1} parent=5 // pred_check
        _
      $region54: #{neucf_forward.1} parent=5 // pred_check_branch
        %306 = sbr.rel (%p303) target = $region56
      $region55: #{neucf_forward.1} parent=5 // pred_region
        %s307 = ssub.s32 %s18, 1
        %s308 = smul.u32 32, %s23
        %p309 = scmp.lt.s32.totalorder %s308, 63
        %s310 = scalar_select %p309, %s308, 63
        %s311 = smul.addr %s310, 4
        %s312 = scalar_lea.vmem %s0, %s311
        %p313 = pneg %p44
        %p314 = pneg %p41
        %s315 = smul.u32 32, %s23
        %p316 = scmp.lt.s32.totalorder %s315, 63
        %s317 = scalar_select %p316, %s315, 63
        %s318 = smul.addr %s317, 4
        %s319 = scalar_lea.vmem %s1, %s318
        %p320 = pneg %p70
        %p321 = pneg %p67
        %p322 = pneg %p91
        %p323 = pneg %p88
        %p324 = pneg %p112
        %p325 = pneg %p109
        %p326 = pneg %p133
        %p327 = pneg %p130
        %p328 = pneg %p154
        %p329 = pneg %p151
        %p330 = pneg %p175
        %p331 = pneg %p172
        %p332 = pneg %p196
        %p333 = pneg %p193
        %p334 = pneg %p217
        %p335 = pneg %p214
        %p336 = pneg %p243
        %p337 = pneg %p240
        %s338 = sand.u32 %s230, 1
        %s339 = scalar_lea.sflag [#allocation3], %s338
        %s340 = sand.u32 %s230, 1
        %s341 = smul.addr %s340, 2
        %s342 = scalar_lea.vmem [#allocation2], %s341
        %s343 = smul.u32 32, %s23
        %p344 = scmp.lt.s32.totalorder %s343, 63
        %s345 = scalar_select %p344, %s343, 63
        %s346 = smul.addr %s345, 4
        %s347 = scalar_lea.vmem %s0, %s346
        %s348 = smul.u32 32, %s23
        %s349 = smul.u32 32, %s23
        %p350 = scmp.lt.s32.totalorder %s349, 63
        %s351 = scalar_select %p350, %s349, 63
        %s352 = smul.addr %s351, 4
        %s353 = scalar_lea.vmem %s1, %s352
        %s354 = smul.u32 32, %s23
        %v356 = vld [vmem:[%s347] sm:$0xf]
        %v357 = vld [vmem:[%s347 + $0x4] sm:$0xf]
        %v358 = vld [vmem:[%s347 + $0x8] sm:$0xf]
        %v359 = vld [vmem:[%s347 + $0xc] sm:$0xf]
        %v360 = vld [vmem:[%s347 + $0x10] sm:$0xf]
        %v361 = vld [vmem:[%s347 + $0x14] sm:$0xf]
        %v362 = vld [vmem:[%s347 + $0x18] sm:$0xf]
        %v363 = vld [vmem:[%s347 + $0x1c] sm:$0xf]
        %v364 = vld [vmem:[%s347 + $0x20] sm:$0xf]
        %v365 = vld [vmem:[%s347 + $0x24] sm:$0xf]
        %v366 = vld [vmem:[%s347 + $0x28] sm:$0xf]
        %v367 = vld [vmem:[%s347 + $0x2c] sm:$0xf]
        %v368 = vld [vmem:[%s347 + $0x30] sm:$0xf]
        %v369 = vld [vmem:[%s347 + $0x34] sm:$0xf]
        %v370 = vld [vmem:[%s347 + $0x38] sm:$0xf]
        %v371 = vld [vmem:[%s347 + $0x3c] sm:$0xf]
        %v372 = vld [vmem:[%s347 + $0x40] sm:$0xf]
        %v373 = vld [vmem:[%s347 + $0x44] sm:$0xf]
        %v374 = vld [vmem:[%s347 + $0x48] sm:$0xf]
        %v375 = vld [vmem:[%s347 + $0x4c] sm:$0xf]
        %v376 = vld [vmem:[%s347 + $0x50] sm:$0xf]
        %v377 = vld [vmem:[%s347 + $0x54] sm:$0xf]
        %v378 = vld [vmem:[%s347 + $0x58] sm:$0xf]
        %v379 = vld [vmem:[%s347 + $0x5c] sm:$0xf]
        %v380 = vld [vmem:[%s347 + $0x60] sm:$0xf]
        %v381 = vld [vmem:[%s347 + $0x64] sm:$0xf]
        %v382 = vld [vmem:[%s347 + $0x68] sm:$0xf]
        %v383 = vld [vmem:[%s347 + $0x6c] sm:$0xf]
        %v384 = vld [vmem:[%s347 + $0x70] sm:$0xf]
        %v385 = vld [vmem:[%s347 + $0x74] sm:$0xf]
        %v386 = vld [vmem:[%s347 + $0x78] sm:$0xf]
        %v387 = vld [vmem:[%s347 + $0x7c] sm:$0xf]
        %v388 = vld [vmem:[%s353] sm:$0xf]
        %v389 = vld [vmem:[%s353 + $0x4] sm:$0xf]
        %v390 = vld [vmem:[%s353 + $0x8] sm:$0xf]
        %v391 = vld [vmem:[%s353 + $0xc] sm:$0xf]
        %v392 = vld [vmem:[%s353 + $0x10] sm:$0xf]
        %v393 = vld [vmem:[%s353 + $0x14] sm:$0xf]
        %v394 = vld [vmem:[%s353 + $0x18] sm:$0xf]
        %v395 = vld [vmem:[%s353 + $0x1c] sm:$0xf]
        %v396 = vld [vmem:[%s353 + $0x20] sm:$0xf]
        %v397 = vld [vmem:[%s353 + $0x24] sm:$0xf]
        %v398 = vld [vmem:[%s353 + $0x28] sm:$0xf]
        %v399 = vld [vmem:[%s353 + $0x2c] sm:$0xf]
        %v400 = vld [vmem:[%s353 + $0x30] sm:$0xf]
        %v401 = vld [vmem:[%s353 + $0x34] sm:$0xf]
        %v402 = vld [vmem:[%s353 + $0x38] sm:$0xf]
        %v403 = vld [vmem:[%s353 + $0x3c] sm:$0xf]
        %v404 = vld [vmem:[%s353 + $0x40] sm:$0xf]
        %v405 = vld [vmem:[%s353 + $0x44] sm:$0xf]
        %v406 = vld [vmem:[%s353 + $0x48] sm:$0xf]
        %v407 = vld [vmem:[%s353 + $0x4c] sm:$0xf]
        %v408 = vld [vmem:[%s353 + $0x50] sm:$0xf]
        %v409 = vld [vmem:[%s353 + $0x54] sm:$0xf]
        %v410 = vld [vmem:[%s353 + $0x58] sm:$0xf]
        %v411 = vld [vmem:[%s353 + $0x5c] sm:$0xf]
        %v412 = vld [vmem:[%s353 + $0x60] sm:$0xf]
        %v413 = vld [vmem:[%s353 + $0x64] sm:$0xf]
        %v414 = vld [vmem:[%s353 + $0x68] sm:$0xf]
        %v415 = vld [vmem:[%s353 + $0x6c] sm:$0xf]
        %v416 = vld [vmem:[%s353 + $0x70] sm:$0xf]
        %v417 = vld [vmem:[%s353 + $0x74] sm:$0xf]
        %v418 = vld [vmem:[%s353 + $0x78] sm:$0xf]
        %v419 = vld [vmem:[%s353 + $0x7c] sm:$0xf]
        %v420 = vld [vmem:[%s7] sm:$0xff]
        %v421 = vld [vmem:[%s7 + $0x8] sm:$0xff]
        %v422 = vld [vmem:[%s7 + $0x10] sm:$0xff]
        %v423 = vld [vmem:[%s7 + $0x18] sm:$0xff]
        %v424 = vld [vmem:[%s7 + $0x20] sm:$0xff]
        %v425 = vld [vmem:[%s7 + $0x28] sm:$0xff]
        %v426 = vld [vmem:[%s7 + $0x30] sm:$0xff]
        %v427 = vld [vmem:[%s7 + $0x38] sm:$0xff]
        %v428 = vld [vmem:[%s7 + $0x40] sm:$0xff]
        %v429 = vld [vmem:[%s7 + $0x48] sm:$0xff]
        %v430 = vld [vmem:[%s7 + $0x50] sm:$0xff]
        %v431 = vld [vmem:[%s7 + $0x58] sm:$0xff]
        %v432 = vld [vmem:[%s7 + $0x60] sm:$0xff]
        %v433 = vld [vmem:[%s7 + $0x68] sm:$0xff]
        %v434 = vld [vmem:[%s7 + $0x70] sm:$0xff]
        %v435 = vld [vmem:[%s7 + $0x78] sm:$0x1]
        %v436 = vunpack.c.l.bf16 %v356
        %v437 = vunpack.c.l.bf16 %v357
        %v438 = vunpack.c.l.bf16 %v358
        %v439 = vunpack.c.l.bf16 %v359
        %v440 = vunpack.c.l.bf16 %v360
        %v441 = vunpack.c.l.bf16 %v361
        %v442 = vunpack.c.l.bf16 %v362
        %v443 = vunpack.c.l.bf16 %v363
        %v444 = vunpack.c.l.bf16 %v364
        %v445 = vunpack.c.l.bf16 %v365
        %v446 = vunpack.c.l.bf16 %v366
        %v447 = vunpack.c.l.bf16 %v367
        %v448 = vunpack.c.l.bf16 %v368
        %v449 = vunpack.c.l.bf16 %v369
        %v450 = vunpack.c.l.bf16 %v370
        %v451 = vunpack.c.l.bf16 %v371
        %v452 = vunpack.c.l.bf16 %v372
        %v453 = vunpack.c.l.bf16 %v373
        %v454 = vunpack.c.l.bf16 %v374
        %v455 = vunpack.c.l.bf16 %v375
        %v456 = vunpack.c.l.bf16 %v376
        %v457 = vunpack.c.l.bf16 %v377
        %v458 = vunpack.c.l.bf16 %v378
        %v459 = vunpack.c.l.bf16 %v379
        %v460 = vunpack.c.l.bf16 %v380
        %v461 = vunpack.c.l.bf16 %v381
        %v462 = vunpack.c.l.bf16 %v382
        %v463 = vunpack.c.l.bf16 %v383
        %v464 = vunpack.c.l.bf16 %v384
        %v465 = vunpack.c.l.bf16 %v385
        %v466 = vunpack.c.l.bf16 %v386
        %v467 = vunpack.c.l.bf16 %v387
        %v468 = vunpack.c.l.bf16 %v388
        %v469 = vunpack.c.l.bf16 %v389
        %v470 = vunpack.c.l.bf16 %v390
        %v471 = vunpack.c.l.bf16 %v391
        %v472 = vunpack.c.l.bf16 %v392
        %v473 = vunpack.c.l.bf16 %v393
        %v474 = vunpack.c.l.bf16 %v394
        %v475 = vunpack.c.l.bf16 %v395
        %v476 = vunpack.c.l.bf16 %v396
        %v477 = vunpack.c.l.bf16 %v397
        %v478 = vunpack.c.l.bf16 %v398
        %v479 = vunpack.c.l.bf16 %v399
        %v480 = vunpack.c.l.bf16 %v400
        %v481 = vunpack.c.l.bf16 %v401
        %v482 = vunpack.c.l.bf16 %v402
        %v483 = vunpack.c.l.bf16 %v403
        %v484 = vunpack.c.l.bf16 %v404
        %v485 = vunpack.c.l.bf16 %v405
        %v486 = vunpack.c.l.bf16 %v406
        %v487 = vunpack.c.l.bf16 %v407
        %v488 = vunpack.c.l.bf16 %v408
        %v489 = vunpack.c.l.bf16 %v409
        %v490 = vunpack.c.l.bf16 %v410
        %v491 = vunpack.c.l.bf16 %v411
        %v492 = vunpack.c.l.bf16 %v412
        %v493 = vunpack.c.l.bf16 %v413
        %v494 = vunpack.c.l.bf16 %v414
        %v495 = vunpack.c.l.bf16 %v415
        %v496 = vunpack.c.l.bf16 %v416
        %v497 = vunpack.c.l.bf16 %v417
        %v498 = vunpack.c.l.bf16 %v418
        %v499 = vunpack.c.l.bf16 %v419
        %v500 = vmul.f32 %v436, %v468
        %v501 = vmul.f32 %v437, %v469
        %v502 = vmul.f32 %v438, %v470
        %v503 = vmul.f32 %v439, %v471
        %v504 = vmul.f32 %v440, %v472
        %v505 = vmul.f32 %v441, %v473
        %v506 = vmul.f32 %v442, %v474
        %v507 = vmul.f32 %v443, %v475
        %v508 = vmul.f32 %v444, %v476
        %v509 = vmul.f32 %v445, %v477
        %v510 = vmul.f32 %v446, %v478
        %v511 = vmul.f32 %v447, %v479
        %v512 = vmul.f32 %v448, %v480
        %v513 = vmul.f32 %v449, %v481
        %v514 = vmul.f32 %v450, %v482
        %v515 = vmul.f32 %v451, %v483
        %v516 = vmul.f32 %v452, %v484
        %v517 = vmul.f32 %v453, %v485
        %v518 = vmul.f32 %v454, %v486
        %v519 = vmul.f32 %v455, %v487
        %v520 = vmul.f32 %v456, %v488
        %v521 = vmul.f32 %v457, %v489
        %v522 = vmul.f32 %v458, %v490
        %v523 = vmul.f32 %v459, %v491
        %v524 = vmul.f32 %v460, %v492
        %v525 = vmul.f32 %v461, %v493
        %v526 = vmul.f32 %v462, %v494
        %v527 = vmul.f32 %v463, %v495
        %v528 = vmul.f32 %v464, %v496
        %v529 = vmul.f32 %v465, %v497
        %v530 = vmul.f32 %v466, %v498
        %v531 = vmul.f32 %v467, %v499
        %v532 = vld [vmem:[%s2] sm:$0xf]
        %v533 = vld [vmem:[%s2 + $0x4] sm:$0xf]
        %v534 = vld [vmem:[%s2 + $0x8] sm:$0xf]
        %v535 = vld [vmem:[%s2 + $0xc] sm:$0xf]
        %v536 = vld [vmem:[%s2 + $0x10] sm:$0xf]
        %v537 = vld [vmem:[%s2 + $0x14] sm:$0xf]
        %v538 = vld [vmem:[%s2 + $0x18] sm:$0xf]
        %v539 = vld [vmem:[%s2 + $0x1c] sm:$0xf]
        %v540 = vld [vmem:[%s3] sm:$0xf]
        %v541 = vld [vmem:[%s3 + $0x4] sm:$0xf]
        %v542 = vld [vmem:[%s3 + $0x8] sm:$0xf]
        %v543 = vld [vmem:[%s3 + $0xc] sm:$0xf]
        %v544 = vld [vmem:[%s3 + $0x10] sm:$0xf]
        %v545 = vld [vmem:[%s3 + $0x14] sm:$0xf]
        %v546 = vld [vmem:[%s3 + $0x18] sm:$0xf]
        %v547 = vld [vmem:[%s3 + $0x1c] sm:$0xf]
        %v556 = vunpack.c.l.b16 %v540
        %v557 = vunpack.c.l.b16 %v541
        %v558 = vunpack.c.l.b16 %v542
        %v559 = vunpack.c.l.b16 %v543
        %v560 = vunpack.c.l.b16 %v544
        %v561 = vunpack.c.l.b16 %v545
        %v562 = vunpack.c.l.b16 %v546
        %v563 = vunpack.c.l.b16 %v547
        %v564 = vpack.c.b16 %v557, %v556
        %v565 = vpack.c.b16 %v559, %v558
        %v566 = vpack.c.b16 %v561, %v560
        %v567 = vpack.c.b16 %v563, %v562
        %v600 = vunpack.c.l.b16 %v388
        %v601 = vunpack.c.l.b16 %v389
        %v602 = vunpack.c.l.b16 %v390
        %v603 = vunpack.c.l.b16 %v391
        %v604 = vunpack.c.l.b16 %v392
        %v605 = vunpack.c.l.b16 %v393
        %v606 = vunpack.c.l.b16 %v394
        %v607 = vunpack.c.l.b16 %v395
        %v608 = vunpack.c.l.b16 %v396
        %v609 = vunpack.c.l.b16 %v397
        %v610 = vunpack.c.l.b16 %v398
        %v611 = vunpack.c.l.b16 %v399
        %v612 = vunpack.c.l.b16 %v400
        %v613 = vunpack.c.l.b16 %v401
        %v614 = vunpack.c.l.b16 %v402
        %v615 = vunpack.c.l.b16 %v403
        %v616 = vunpack.c.l.b16 %v404
        %v617 = vunpack.c.l.b16 %v405
        %v618 = vunpack.c.l.b16 %v406
        %v619 = vunpack.c.l.b16 %v407
        %v620 = vunpack.c.l.b16 %v408
        %v621 = vunpack.c.l.b16 %v409
        %v622 = vunpack.c.l.b16 %v410
        %v623 = vunpack.c.l.b16 %v411
        %v624 = vunpack.c.l.b16 %v412
        %v625 = vunpack.c.l.b16 %v413
        %v626 = vunpack.c.l.b16 %v414
        %v627 = vunpack.c.l.b16 %v415
        %v628 = vunpack.c.l.b16 %v416
        %v629 = vunpack.c.l.b16 %v417
        %v630 = vunpack.c.l.b16 %v418
        %v631 = vunpack.c.l.b16 %v419
        %v632 = vpack.c.b16 %v601, %v600
        %v633 = vpack.c.b16 %v603, %v602
        %v634 = vpack.c.b16 %v605, %v604
        %v635 = vpack.c.b16 %v607, %v606
        %v636 = vpack.c.b16 %v609, %v608
        %v637 = vpack.c.b16 %v611, %v610
        %v638 = vpack.c.b16 %v613, %v612
        %v639 = vpack.c.b16 %v615, %v614
        %v640 = vpack.c.b16 %v617, %v616
        %v641 = vpack.c.b16 %v619, %v618
        %v642 = vpack.c.b16 %v621, %v620
        %v643 = vpack.c.b16 %v623, %v622
        %v644 = vpack.c.b16 %v625, %v624
        %v645 = vpack.c.b16 %v627, %v626
        %v646 = vpack.c.b16 %v629, %v628
        %v647 = vpack.c.b16 %v631, %v630
        %648 = vrot.lane.b32.xlu0 %v632, 96
        %v649 = vpop.permute.xlu0 %648
        %650 = vrot.lane.b32.xlu0 %v633, 96
        %v651 = vpop.permute.xlu0 %650
        %652 = vrot.lane.b32.xlu0 %v634, 96
        %v653 = vpop.permute.xlu0 %652
        %654 = vrot.lane.b32.xlu0 %v635, 96
        %v655 = vpop.permute.xlu0 %654
        %656 = vrot.lane.b32.xlu0 %v636, 96
        %v657 = vpop.permute.xlu0 %656
        %658 = vrot.lane.b32.xlu0 %v637, 96
        %v659 = vpop.permute.xlu0 %658
        %660 = vrot.lane.b32.xlu0 %v638, 96
        %v661 = vpop.permute.xlu0 %660
        %662 = vrot.lane.b32.xlu0 %v639, 96
        %v663 = vpop.permute.xlu0 %662
        %664 = vrot.lane.b32.xlu0 %v640, 96
        %v665 = vpop.permute.xlu0 %664
        %666 = vrot.lane.b32.xlu0 %v641, 96
        %v667 = vpop.permute.xlu0 %666
        %668 = vrot.lane.b32.xlu0 %v642, 96
        %v669 = vpop.permute.xlu0 %668
        %670 = vrot.lane.b32.xlu0 %v643, 96
        %v671 = vpop.permute.xlu0 %670
        %672 = vrot.lane.b32.xlu0 %v644, 96
        %v673 = vpop.permute.xlu0 %672
        %674 = vrot.lane.b32.xlu0 %v645, 96
        %v675 = vpop.permute.xlu0 %674
        %676 = vrot.lane.b32.xlu0 %v646, 96
        %v677 = vpop.permute.xlu0 %676
        %678 = vrot.lane.b32.xlu0 %v647, 96
        %v679 = vpop.permute.xlu0 %678
        %vm680 = vcmask 261120
        %v682 = vsel %vm680, %v564, 0
        %v685 = vsel %vm680, %v565, 0
        %v688 = vsel %vm680, %v566, 0
        %v691 = vsel %vm680, %v567, 0
        %v694 = vsel %vm680, %v649, 0
        %v697 = vsel %vm680, %v651, 0
        %v700 = vsel %vm680, %v653, 0
        %v703 = vsel %vm680, %v655, 0
        %v706 = vsel %vm680, %v657, 0
        %v709 = vsel %vm680, %v659, 0
        %v712 = vsel %vm680, %v661, 0
        %v715 = vsel %vm680, %v663, 0
        %v718 = vsel %vm680, %v665, 0
        %v721 = vsel %vm680, %v667, 0
        %v724 = vsel %vm680, %v669, 0
        %v727 = vsel %vm680, %v671, 0
        %v730 = vsel %vm680, %v673, 0
        %v733 = vsel %vm680, %v675, 0
        %v736 = vsel %vm680, %v677, 0
        %v739 = vsel %vm680, %v679, 0
        %741 = vmatpush.bf16.xpose.msra.mxu0 %v715
        %742 = vmatpush.bf16.xpose.msra.mxu0 %v712
        %743 = vmatpush.bf16.xpose.msra.mxu0 %v709
        %744 = vmatpush.bf16.xpose.msra.mxu0 %v706
        %745 = vmatpush.bf16.xpose.msra.mxu0 %v703
        %746 = vmatpush.bf16.xpose.msra.mxu0 %v700
        %747 = vmatpush.bf16.xpose.msra.mxu0 %v697
        %748 = vmatpush.bf16.xpose.msra.mxu0 %v694
        %749 = vmatmul.bf16.gmra.mxu0 %v682
        %v750 = vpop.f32.mrf.mxu0
        %v751 = vadd.f32 0.0, %v750
        %v752 = vpop.f32.mrf.mxu0
        %v753 = vadd.f32 0.0, %v752
        %754 = vmatmul.bf16.gmra.mxu0 %v685
        %v755 = vpop.f32.mrf.mxu0
        %v756 = vadd.f32 0.0, %v755
        %v757 = vpop.f32.mrf.mxu0
        %v758 = vadd.f32 0.0, %v757
        %759 = vmatmul.bf16.gmra.mxu0 %v688
        %v760 = vpop.f32.mrf.mxu0
        %v761 = vadd.f32 0.0, %v760
        %v762 = vpop.f32.mrf.mxu0
        %v763 = vadd.f32 0.0, %v762
        %764 = vmatmul.bf16.gmra.mxu0 %v691
        %v765 = vpop.f32.mrf.mxu0
        %v766 = vadd.f32 0.0, %v765
        %v767 = vpop.f32.mrf.mxu0
        %v768 = vadd.f32 0.0, %v767
        %769 = vdwg.mxu0
        %770 = vmatpush.bf16.xpose.msra.mxu0 %v739
        %771 = vmatpush.bf16.xpose.msra.mxu0 %v736
        %772 = vmatpush.bf16.xpose.msra.mxu0 %v733
        %773 = vmatpush.bf16.xpose.msra.mxu0 %v730
        %774 = vmatpush.bf16.xpose.msra.mxu0 %v727
        %775 = vmatpush.bf16.xpose.msra.mxu0 %v724
        %776 = vmatpush.bf16.xpose.msra.mxu0 %v721
        %777 = vmatpush.bf16.xpose.msra.mxu0 %v718
        %778 = vmatmul.bf16.gmra.mxu0 %v682
        %v779 = vpop.f32.mrf.mxu0
        %v780 = vadd.f32 0.0, %v779
        %v781 = vpop.f32.mrf.mxu0
        %v782 = vadd.f32 0.0, %v781
        %783 = vmatmul.bf16.gmra.mxu0 %v685
        %v784 = vpop.f32.mrf.mxu0
        %v785 = vadd.f32 0.0, %v784
        %v786 = vpop.f32.mrf.mxu0
        %v787 = vadd.f32 0.0, %v786
        %788 = vmatmul.bf16.gmra.mxu0 %v688
        %v789 = vpop.f32.mrf.mxu0
        %v790 = vadd.f32 0.0, %v789
        %v791 = vpop.f32.mrf.mxu0
        %v792 = vadd.f32 0.0, %v791
        %793 = vmatmul.bf16.gmra.mxu0 %v691
        %v794 = vpop.f32.mrf.mxu0
        %v795 = vadd.f32 0.0, %v794
        %v796 = vpop.f32.mrf.mxu0
        %v797 = vadd.f32 0.0, %v796
        %798 = vdwg.mxu0
        %v807 = vunpack.c.l.b16 %v532
        %v808 = vunpack.c.l.b16 %v533
        %v809 = vunpack.c.l.b16 %v534
        %v810 = vunpack.c.l.b16 %v535
        %v811 = vunpack.c.l.b16 %v536
        %v812 = vunpack.c.l.b16 %v537
        %v813 = vunpack.c.l.b16 %v538
        %v814 = vunpack.c.l.b16 %v539
        %v815 = vpack.c.b16 %v808, %v807
        %v816 = vpack.c.b16 %v810, %v809
        %v817 = vpack.c.b16 %v812, %v811
        %v818 = vpack.c.b16 %v814, %v813
        %v851 = vunpack.c.l.b16 %v356
        %v852 = vunpack.c.l.b16 %v357
        %v853 = vunpack.c.l.b16 %v358
        %v854 = vunpack.c.l.b16 %v359
        %v855 = vunpack.c.l.b16 %v360
        %v856 = vunpack.c.l.b16 %v361
        %v857 = vunpack.c.l.b16 %v362
        %v858 = vunpack.c.l.b16 %v363
        %v859 = vunpack.c.l.b16 %v364
        %v860 = vunpack.c.l.b16 %v365
        %v861 = vunpack.c.l.b16 %v366
        %v862 = vunpack.c.l.b16 %v367
        %v863 = vunpack.c.l.b16 %v368
        %v864 = vunpack.c.l.b16 %v369
        %v865 = vunpack.c.l.b16 %v370
        %v866 = vunpack.c.l.b16 %v371
        %v867 = vunpack.c.l.b16 %v372
        %v868 = vunpack.c.l.b16 %v373
        %v869 = vunpack.c.l.b16 %v374
        %v870 = vunpack.c.l.b16 %v375
        %v871 = vunpack.c.l.b16 %v376
        %v872 = vunpack.c.l.b16 %v377
        %v873 = vunpack.c.l.b16 %v378
        %v874 = vunpack.c.l.b16 %v379
        %v875 = vunpack.c.l.b16 %v380
        %v876 = vunpack.c.l.b16 %v381
        %v877 = vunpack.c.l.b16 %v382
        %v878 = vunpack.c.l.b16 %v383
        %v879 = vunpack.c.l.b16 %v384
        %v880 = vunpack.c.l.b16 %v385
        %v881 = vunpack.c.l.b16 %v386
        %v882 = vunpack.c.l.b16 %v387
        %v883 = vpack.c.b16 %v852, %v851
        %v884 = vpack.c.b16 %v854, %v853
        %v885 = vpack.c.b16 %v856, %v855
        %v886 = vpack.c.b16 %v858, %v857
        %v887 = vpack.c.b16 %v860, %v859
        %v888 = vpack.c.b16 %v862, %v861
        %v889 = vpack.c.b16 %v864, %v863
        %v890 = vpack.c.b16 %v866, %v865
        %v891 = vpack.c.b16 %v868, %v867
        %v892 = vpack.c.b16 %v870, %v869
        %v893 = vpack.c.b16 %v872, %v871
        %v894 = vpack.c.b16 %v874, %v873
        %v895 = vpack.c.b16 %v876, %v875
        %v896 = vpack.c.b16 %v878, %v877
        %v897 = vpack.c.b16 %v880, %v879
        %v898 = vpack.c.b16 %v882, %v881
        %899 = vrot.lane.b32.xlu0 %v883, 96
        %v900 = vpop.permute.xlu0 %899
        %901 = vrot.lane.b32.xlu0 %v884, 96
        %v902 = vpop.permute.xlu0 %901
        %903 = vrot.lane.b32.xlu0 %v885, 96
        %v904 = vpop.permute.xlu0 %903
        %905 = vrot.lane.b32.xlu0 %v886, 96
        %v906 = vpop.permute.xlu0 %905
        %907 = vrot.lane.b32.xlu0 %v887, 96
        %v908 = vpop.permute.xlu0 %907
        %909 = vrot.lane.b32.xlu0 %v888, 96
        %v910 = vpop.permute.xlu0 %909
        %911 = vrot.lane.b32.xlu0 %v889, 96
        %v912 = vpop.permute.xlu0 %911
        %913 = vrot.lane.b32.xlu0 %v890, 96
        %v914 = vpop.permute.xlu0 %913
        %915 = vrot.lane.b32.xlu0 %v891, 96
        %v916 = vpop.permute.xlu0 %915
        %917 = vrot.lane.b32.xlu0 %v892, 96
        %v918 = vpop.permute.xlu0 %917
        %919 = vrot.lane.b32.xlu0 %v893, 96
        %v920 = vpop.permute.xlu0 %919
        %921 = vrot.lane.b32.xlu0 %v894, 96
        %v922 = vpop.permute.xlu0 %921
        %923 = vrot.lane.b32.xlu0 %v895, 96
        %v924 = vpop.permute.xlu0 %923
        %925 = vrot.lane.b32.xlu0 %v896, 96
        %v926 = vpop.permute.xlu0 %925
        %927 = vrot.lane.b32.xlu0 %v897, 96
        %v928 = vpop.permute.xlu0 %927
        %929 = vrot.lane.b32.xlu0 %v898, 96
        %v930 = vpop.permute.xlu0 %929
        %v932 = vsel %vm680, %v815, 0
        %v935 = vsel %vm680, %v816, 0
        %v938 = vsel %vm680, %v817, 0
        %v941 = vsel %vm680, %v818, 0
        %v944 = vsel %vm680, %v900, 0
        %v947 = vsel %vm680, %v902, 0
        %v950 = vsel %vm680, %v904, 0
        %v953 = vsel %vm680, %v906, 0
        %v956 = vsel %vm680, %v908, 0
        %v959 = vsel %vm680, %v910, 0
        %v962 = vsel %vm680, %v912, 0
        %v965 = vsel %vm680, %v914, 0
        %v968 = vsel %vm680, %v916, 0
        %v971 = vsel %vm680, %v918, 0
        %v974 = vsel %vm680, %v920, 0
        %v977 = vsel %vm680, %v922, 0
        %v980 = vsel %vm680, %v924, 0
        %v983 = vsel %vm680, %v926, 0
        %v986 = vsel %vm680, %v928, 0
        %v989 = vsel %vm680, %v930, 0
        %991 = vmatpush.bf16.xpose.msra.mxu0 %v965
        %992 = vmatpush.bf16.xpose.msra.mxu0 %v962
        %993 = vmatpush.bf16.xpose.msra.mxu0 %v959
        %994 = vmatpush.bf16.xpose.msra.mxu0 %v956
        %995 = vmatpush.bf16.xpose.msra.mxu0 %v953
        %996 = vmatpush.bf16.xpose.msra.mxu0 %v950
        %997 = vmatpush.bf16.xpose.msra.mxu0 %v947
        %998 = vmatpush.bf16.xpose.msra.mxu0 %v944
        %999 = vmatmul.bf16.gmra.mxu0 %v932
        %v1000 = vpop.f32.mrf.mxu0
        %v1001 = vadd.f32 %v751, %v1000
        %v1002 = vpop.f32.mrf.mxu0
        %v1003 = vadd.f32 %v753, %v1002
        %1004 = vmatmul.bf16.gmra.mxu0 %v935
        %v1005 = vpop.f32.mrf.mxu0
        %v1006 = vadd.f32 %v756, %v1005
        %v1007 = vpop.f32.mrf.mxu0
        %v1008 = vadd.f32 %v758, %v1007
        %1009 = vmatmul.bf16.gmra.mxu0 %v938
        %v1010 = vpop.f32.mrf.mxu0
        %v1011 = vadd.f32 %v761, %v1010
        %v1012 = vpop.f32.mrf.mxu0
        %v1013 = vadd.f32 %v763, %v1012
        %1014 = vmatmul.bf16.gmra.mxu0 %v941
        %v1015 = vpop.f32.mrf.mxu0
        %v1016 = vadd.f32 %v766, %v1015
        %v1017 = vpop.f32.mrf.mxu0
        %v1018 = vadd.f32 %v768, %v1017
        %1019 = vdwg.mxu0
        %1020 = vmatpush.bf16.xpose.msra.mxu0 %v989
        %1021 = vmatpush.bf16.xpose.msra.mxu0 %v986
        %1022 = vmatpush.bf16.xpose.msra.mxu0 %v983
        %1023 = vmatpush.bf16.xpose.msra.mxu0 %v980
        %1024 = vmatpush.bf16.xpose.msra.mxu0 %v977
        %1025 = vmatpush.bf16.xpose.msra.mxu0 %v974
        %1026 = vmatpush.bf16.xpose.msra.mxu0 %v971
        %1027 = vmatpush.bf16.xpose.msra.mxu0 %v968
        %1028 = vmatmul.bf16.gmra.mxu0 %v932
        %v1029 = vpop.f32.mrf.mxu0
        %v1030 = vadd.f32 %v780, %v1029
        %v1031 = vpop.f32.mrf.mxu0
        %v1032 = vadd.f32 %v782, %v1031
        %1033 = vmatmul.bf16.gmra.mxu0 %v935
        %v1034 = vpop.f32.mrf.mxu0
        %v1035 = vadd.f32 %v785, %v1034
        %v1036 = vpop.f32.mrf.mxu0
        %v1037 = vadd.f32 %v787, %v1036
        %1038 = vmatmul.bf16.gmra.mxu0 %v938
        %v1039 = vpop.f32.mrf.mxu0
        %v1040 = vadd.f32 %v790, %v1039
        %v1041 = vpop.f32.mrf.mxu0
        %v1042 = vadd.f32 %v792, %v1041
        %1043 = vmatmul.bf16.gmra.mxu0 %v941
        %v1044 = vpop.f32.mrf.mxu0
        %v1045 = vadd.f32 %v795, %v1044
        %v1046 = vpop.f32.mrf.mxu0
        %v1047 = vadd.f32 %v797, %v1046
        %1048 = vdwg.mxu0
        %1050 = vset.pattern.permute.xlu0 0
        %1051 = vperm.xlu0 %1050, %v420
        %v1052 = vpop.permute.xlu0 %1051
        %1055 = vset.pattern.permute.xlu0 0
        %1056 = vperm.xlu0 %1055, %v421
        %v1057 = vpop.permute.xlu0 %1056
        %1060 = vset.pattern.permute.xlu0 0
        %1061 = vperm.xlu0 %1060, %v422
        %v1062 = vpop.permute.xlu0 %1061
        %1065 = vset.pattern.permute.xlu0 0
        %1066 = vperm.xlu0 %1065, %v423
        %v1067 = vpop.permute.xlu0 %1066
        %1070 = vset.pattern.permute.xlu0 0
        %1071 = vperm.xlu0 %1070, %v424
        %v1072 = vpop.permute.xlu0 %1071
        %1075 = vset.pattern.permute.xlu0 0
        %1076 = vperm.xlu0 %1075, %v425
        %v1077 = vpop.permute.xlu0 %1076
        %1080 = vset.pattern.permute.xlu0 0
        %1081 = vperm.xlu0 %1080, %v426
        %v1082 = vpop.permute.xlu0 %1081
        %1085 = vset.pattern.permute.xlu0 0
        %1086 = vperm.xlu0 %1085, %v427
        %v1087 = vpop.permute.xlu0 %1086
        %v1089 = vadd.f32 %v1001, %v1052
        %v1090 = vadd.f32 %v1030, %v1052
        %v1091 = vadd.f32 %v1003, %v1057
        %v1092 = vadd.f32 %v1032, %v1057
        %v1093 = vadd.f32 %v1006, %v1062
        %v1094 = vadd.f32 %v1035, %v1062
        %v1095 = vadd.f32 %v1008, %v1067
        %v1096 = vadd.f32 %v1037, %v1067
        %v1097 = vadd.f32 %v1011, %v1072
        %v1098 = vadd.f32 %v1040, %v1072
        %v1099 = vadd.f32 %v1013, %v1077
        %v1100 = vadd.f32 %v1042, %v1077
        %v1101 = vadd.f32 %v1016, %v1082
        %v1102 = vadd.f32 %v1045, %v1082
        %v1103 = vadd.f32 %v1018, %v1087
        %v1104 = vadd.f32 %v1047, %v1087
        %v1105 = vmax.f32 %v1089, 0.0
        %v1106 = vmax.f32 %v1090, 0.0
        %v1107 = vmax.f32 %v1091, 0.0
        %v1108 = vmax.f32 %v1092, 0.0
        %v1109 = vmax.f32 %v1093, 0.0
        %v1110 = vmax.f32 %v1094, 0.0
        %v1111 = vmax.f32 %v1095, 0.0
        %v1112 = vmax.f32 %v1096, 0.0
        %v1113 = vmax.f32 %v1097, 0.0
        %v1114 = vmax.f32 %v1098, 0.0
        %v1115 = vmax.f32 %v1099, 0.0
        %v1116 = vmax.f32 %v1100, 0.0
        %v1117 = vmax.f32 %v1101, 0.0
        %v1118 = vmax.f32 %v1102, 0.0
        %v1119 = vmax.f32 %v1103, 0.0
        %v1120 = vmax.f32 %v1104, 0.0
        %v1121 = vpack.c.bf16 %v1107, %v1105
        %v1122 = vpack.c.bf16 %v1108, %v1106
        %v1123 = vpack.c.bf16 %v1111, %v1109
        %v1124 = vpack.c.bf16 %v1112, %v1110
        %v1125 = vpack.c.bf16 %v1115, %v1113
        %v1126 = vpack.c.bf16 %v1116, %v1114
        %v1127 = vpack.c.bf16 %v1119, %v1117
        %v1128 = vpack.c.bf16 %v1120, %v1118
        %v1129 = vld [vmem:[%s4] sm:$0xf]
        %v1130 = vld [vmem:[%s4 + $0x4] sm:$0xf]
        %v1131 = vld [vmem:[%s4 + $0x8] sm:$0xf]
        %v1132 = vld [vmem:[%s4 + $0xc] sm:$0xf]
        %1134 = vset.pattern.permute.xlu0 0
        %1135 = vperm.xlu0 %1134, %v428
        %v1136 = vpop.permute.xlu0 %1135
        %1139 = vset.pattern.permute.xlu0 0
        %1140 = vperm.xlu0 %1139, %v429
        %v1141 = vpop.permute.xlu0 %1140
        %1144 = vset.pattern.permute.xlu0 0
        %1145 = vperm.xlu0 %1144, %v430
        %v1146 = vpop.permute.xlu0 %1145
        %1149 = vset.pattern.permute.xlu0 0
        %1150 = vperm.xlu0 %1149, %v431
        %v1151 = vpop.permute.xlu0 %1150
        %v1157 = vunpack.c.l.b16 %v1129
        %v1158 = vunpack.c.l.b16 %v1130
        %v1159 = vunpack.c.l.b16 %v1131
        %v1160 = vunpack.c.l.b16 %v1132
        %v1161 = vpack.c.b16 %v1158, %v1157
        %v1162 = vpack.c.b16 %v1160, %v1159
        %vm1163 = vcmask 523264
        %v1165 = vsel %vm1163, %v1161, 0
        %v1168 = vsel %vm1163, %v1162, 0
        %1170 = vmatpush.bf16.msra.mxu0 0
        %1171 = vmatpush.bf16.msra.mxu0 0
        %1172 = vmatpush.bf16.msra.mxu0 0
        %1173 = vmatpush.bf16.msra.mxu0 0
        %1174 = vmatpush.bf16.msra.mxu0 %v1127
        %1175 = vmatpush.bf16.msra.mxu0 %v1125
        %1176 = vmatpush.bf16.msra.mxu0 %v1123
        %1177 = vmatpush.bf16.msra.mxu0 %v1121
        %1178 = vmatmul.bf16.gmra.mxu0 %v1165
        %v1179 = vpop.f32.mrf.mxu0
        %v1180 = vadd.f32 %v1136, %v1179
        %v1181 = vpop.f32.mrf.mxu0
        %v1182 = vadd.f32 %v1141, %v1181
        %1183 = vmatmul.bf16.gmra.mxu0 %v1168
        %v1184 = vpop.f32.mrf.mxu0
        %v1185 = vadd.f32 %v1146, %v1184
        %v1186 = vpop.f32.mrf.mxu0
        %v1187 = vadd.f32 %v1151, %v1186
        %1188 = vdwg.mxu0
        %1189 = vmatpush.bf16.msra.mxu0 0
        %1190 = vmatpush.bf16.msra.mxu0 0
        %1191 = vmatpush.bf16.msra.mxu0 0
        %1192 = vmatpush.bf16.msra.mxu0 0
        %1193 = vmatpush.bf16.msra.mxu0 %v1128
        %1194 = vmatpush.bf16.msra.mxu0 %v1126
        %1195 = vmatpush.bf16.msra.mxu0 %v1124
        %1196 = vmatpush.bf16.msra.mxu0 %v1122
        %1197 = vmatmul.bf16.gmra.mxu0 %v1165
        %v1198 = vpop.f32.mrf.mxu0
        %v1199 = vadd.f32 %v1136, %v1198
        %v1200 = vpop.f32.mrf.mxu0
        %v1201 = vadd.f32 %v1141, %v1200
        %1202 = vmatmul.bf16.gmra.mxu0 %v1168
        %v1203 = vpop.f32.mrf.mxu0
        %v1204 = vadd.f32 %v1146, %v1203
        %v1205 = vpop.f32.mrf.mxu0
        %v1206 = vadd.f32 %v1151, %v1205
        %1207 = vdwg.mxu0
        %v1208 = vmax.f32 %v1180, 0.0
        %v1209 = vmax.f32 %v1199, 0.0
        %v1210 = vmax.f32 %v1182, 0.0
        %v1211 = vmax.f32 %v1201, 0.0
        %v1212 = vmax.f32 %v1185, 0.0
        %v1213 = vmax.f32 %v1204, 0.0
        %v1214 = vmax.f32 %v1187, 0.0
        %v1215 = vmax.f32 %v1206, 0.0
        %v1216 = vpack.c.bf16 %v1210, %v1208
        %v1217 = vpack.c.bf16 %v1211, %v1209
        %v1218 = vpack.c.bf16 %v1214, %v1212
        %v1219 = vpack.c.bf16 %v1215, %v1213
        %v1220 = vld [vmem:[%s5] sm:$0xf]
        %v1221 = vld [vmem:[%s5 + $0x4] sm:$0xf]
        %1223 = vset.pattern.permute.xlu0 0
        %1224 = vperm.xlu0 %1223, %v432
        %v1225 = vpop.permute.xlu0 %1224
        %1228 = vset.pattern.permute.xlu0 0
        %1229 = vperm.xlu0 %1228, %v433
        %v1230 = vpop.permute.xlu0 %1229
        %v1234 = vunpack.c.l.b16 %v1220
        %v1235 = vunpack.c.l.b16 %v1221
        %v1236 = vpack.c.b16 %v1235, %v1234
        %v1238 = vsel %vm680, %v1236, 0
        %1240 = vmatpush.bf16.msra.mxu0 0
        %1241 = vmatpush.bf16.msra.mxu0 0
        %1242 = vmatpush.bf16.msra.mxu0 0
        %1243 = vmatpush.bf16.msra.mxu0 0
        %1244 = vmatpush.bf16.msra.mxu0 0
        %1245 = vmatpush.bf16.msra.mxu0 0
        %1246 = vmatpush.bf16.msra.mxu0 %v1218
        %1247 = vmatpush.bf16.msra.mxu0 %v1216
        %1248 = vmatmul.bf16.gmra.mxu0 %v1238
        %v1249 = vpop.f32.mrf.mxu0
        %v1250 = vadd.f32 %v1225, %v1249
        %v1251 = vpop.f32.mrf.mxu0
        %v1252 = vadd.f32 %v1230, %v1251
        %1253 = vdwg.mxu0
        %1254 = vmatpush.bf16.msra.mxu0 0
        %1255 = vmatpush.bf16.msra.mxu0 0
        %1256 = vmatpush.bf16.msra.mxu0 0
        %1257 = vmatpush.bf16.msra.mxu0 0
        %1258 = vmatpush.bf16.msra.mxu0 0
        %1259 = vmatpush.bf16.msra.mxu0 0
        %1260 = vmatpush.bf16.msra.mxu0 %v1219
        %1261 = vmatpush.bf16.msra.mxu0 %v1217
        %1262 = vmatmul.bf16.gmra.mxu0 %v1238
        %v1263 = vpop.f32.mrf.mxu0
        %v1264 = vadd.f32 %v1225, %v1263
        %v1265 = vpop.f32.mrf.mxu0
        %v1266 = vadd.f32 %v1230, %v1265
        %1267 = vdwg.mxu0
        %v1268 = vmax.f32 %v1250, 0.0
        %v1269 = vmax.f32 %v1264, 0.0
        %v1270 = vmax.f32 %v1252, 0.0
        %v1271 = vmax.f32 %v1266, 0.0
        %v1272 = vpack.c.bf16 %v1270, %v1268
        %v1273 = vpack.c.bf16 %v1271, %v1269
        %v1274 = vld [vmem:[%s6] sm:$0xf]
        %1276 = vset.pattern.permute.xlu0 0
        %1277 = vperm.xlu0 %1276, %v434
        %v1278 = vpop.permute.xlu0 %1277
        %vm1280 = vcmask 130048
        %v1282 = vsel %vm1280, %v1274, 0
        %1284 = vmatpush.bf16.msra.mxu0 0
        %1285 = vmatpush.bf16.msra.mxu0 0
        %1286 = vmatpush.bf16.msra.mxu0 0
        %1287 = vmatpush.bf16.msra.mxu0 0
        %1288 = vmatpush.bf16.msra.mxu0 0
        %1289 = vmatpush.bf16.msra.mxu0 0
        %1290 = vmatpush.bf16.msra.mxu0 0
        %1291 = vmatpush.bf16.msra.mxu0 %v1272
        %1292 = vmatmul.bf16.gmra.mxu0 %v1282
        %v1293 = vpop.f32.mrf.mxu0
        %v1294 = vadd.f32 %v1278, %v1293
        %v1295 = vpop.f32.mrf.mxu0
        %1296 = vdwg.mxu0
        %1297 = vmatpush.bf16.msra.mxu0 0
        %1298 = vmatpush.bf16.msra.mxu0 0
        %1299 = vmatpush.bf16.msra.mxu0 0
        %1300 = vmatpush.bf16.msra.mxu0 0
        %1301 = vmatpush.bf16.msra.mxu0 0
        %1302 = vmatpush.bf16.msra.mxu0 0
        %1303 = vmatpush.bf16.msra.mxu0 0
        %1304 = vmatpush.bf16.msra.mxu0 %v1273
        %1305 = vmatmul.bf16.gmra.mxu0 %v1282
        %v1306 = vpop.f32.mrf.mxu0
        %v1307 = vadd.f32 %v1278, %v1306
        %v1308 = vpop.f32.mrf.mxu0
        %1309 = vdwg.mxu0
        %v1310 = vmax.f32 %v1294, 0.0
        %v1311 = vmax.f32 %v1307, 0.0
        %v1312 = vld [vmem:[%s8] sm:$0x1]
        %v1314 = vperm.slane %v1312, 0
        %1315 = vrot.lane.b32.xlu0 %v1314, 96
        %v1316 = vpop.permute.xlu0 %1315
        %vm1317 = vcmask 64512
        %v1318 = vsel %vm1317, %v1316, 0
        %1320 = vmatpush.msra.mxu0 0.0
        %1321 = vmatpush.msra.mxu0 0.0
        %1322 = vmatpush.msra.mxu0 0.0
        %1323 = vmatpush.msra.mxu0 0.0
        %1324 = vmatpush.msra.mxu0 0.0
        %1325 = vmatpush.msra.mxu0 0.0
        %1326 = vmatpush.msra.mxu0 0.0
        %1327 = vmatpush.msra.mxu0 0.0
        %1328 = vmatpush.msra.mxu0 0.0
        %1329 = vmatpush.msra.mxu0 0.0
        %1330 = vmatpush.msra.mxu0 0.0
        %1331 = vmatpush.msra.mxu0 0.0
        %1332 = vmatpush.msra.mxu0 0.0
        %1333 = vmatpush.msra.mxu0 0.0
        %1334 = vmatpush.msra.mxu0 0.0
        %1335 = vmatpush.msra.mxu0 %v1310
        %1336 = vmatmul.f32.gmra.mxu0 %v1318
        %v1337 = vpop.f32.mrf.mxu0
        %v1338 = vadd.f32 0.0, %v1337
        %1339 = vdwg.mxu0
        %1340 = vmatpush.msra.mxu0 0.0
        %1341 = vmatpush.msra.mxu0 0.0
        %1342 = vmatpush.msra.mxu0 0.0
        %1343 = vmatpush.msra.mxu0 0.0
        %1344 = vmatpush.msra.mxu0 0.0
        %1345 = vmatpush.msra.mxu0 0.0
        %1346 = vmatpush.msra.mxu0 0.0
        %1347 = vmatpush.msra.mxu0 0.0
        %1348 = vmatpush.msra.mxu0 0.0
        %1349 = vmatpush.msra.mxu0 0.0
        %1350 = vmatpush.msra.mxu0 0.0
        %1351 = vmatpush.msra.mxu0 0.0
        %1352 = vmatpush.msra.mxu0 0.0
        %1353 = vmatpush.msra.mxu0 0.0
        %1354 = vmatpush.msra.mxu0 0.0
        %1355 = vmatpush.msra.mxu0 %v1311
        %1356 = vmatmul.f32.gmra.mxu0 %v1318
        %v1357 = vpop.f32.mrf.mxu0
        %v1358 = vadd.f32 0.0, %v1357
        %1359 = vdwg.mxu0
        %v1360 = vsel %vm680, %v1312, 0
        %v1363 = vsel %vm680, %v500, 0
        %v1366 = vsel %vm680, %v501, 0
        %v1369 = vsel %vm680, %v502, 0
        %v1372 = vsel %vm680, %v503, 0
        %v1375 = vsel %vm680, %v504, 0
        %v1378 = vsel %vm680, %v505, 0
        %v1381 = vsel %vm680, %v506, 0
        %v1384 = vsel %vm680, %v507, 0
        %v1387 = vsel %vm680, %v508, 0
        %v1390 = vsel %vm680, %v509, 0
        %v1393 = vsel %vm680, %v510, 0
        %v1396 = vsel %vm680, %v511, 0
        %v1399 = vsel %vm680, %v512, 0
        %v1402 = vsel %vm680, %v513, 0
        %v1405 = vsel %vm680, %v514, 0
        %v1408 = vsel %vm680, %v515, 0
        %v1411 = vsel %vm680, %v516, 0
        %v1414 = vsel %vm680, %v517, 0
        %v1417 = vsel %vm680, %v518, 0
        %v1420 = vsel %vm680, %v519, 0
        %v1423 = vsel %vm680, %v520, 0
        %v1426 = vsel %vm680, %v521, 0
        %v1429 = vsel %vm680, %v522, 0
        %v1432 = vsel %vm680, %v523, 0
        %v1435 = vsel %vm680, %v524, 0
        %v1438 = vsel %vm680, %v525, 0
        %v1441 = vsel %vm680, %v526, 0
        %v1444 = vsel %vm680, %v527, 0
        %v1447 = vsel %vm680, %v528, 0
        %v1450 = vsel %vm680, %v529, 0
        %v1453 = vsel %vm680, %v530, 0
        %v1456 = vsel %vm680, %v531, 0
        %1458 = vmatpush.xpose.msra.mxu0 %v1408
        %1459 = vmatpush.xpose.msra.mxu0 %v1405
        %1460 = vmatpush.xpose.msra.mxu0 %v1402
        %1461 = vmatpush.xpose.msra.mxu0 %v1399
        %1462 = vmatpush.xpose.msra.mxu0 %v1396
        %1463 = vmatpush.xpose.msra.mxu0 %v1393
        %1464 = vmatpush.xpose.msra.mxu0 %v1390
        %1465 = vmatpush.xpose.msra.mxu0 %v1387
        %1466 = vmatpush.xpose.msra.mxu0 %v1384
        %1467 = vmatpush.xpose.msra.mxu0 %v1381
        %1468 = vmatpush.xpose.msra.mxu0 %v1378
        %1469 = vmatpush.xpose.msra.mxu0 %v1375
        %1470 = vmatpush.xpose.msra.mxu0 %v1372
        %1471 = vmatpush.xpose.msra.mxu0 %v1369
        %1472 = vmatpush.xpose.msra.mxu0 %v1366
        %1473 = vmatpush.xpose.msra.mxu0 %v1363
        %1474 = vmatmul.f32.gmra.mxu0 %v1360
        %v1475 = vpop.f32.mrf.mxu0
        %v1476 = vadd.f32 %v1338, %v1475
        %1477 = vdwg.mxu0
        %1478 = vmatpush.xpose.msra.mxu0 %v1456
        %1479 = vmatpush.xpose.msra.mxu0 %v1453
        %1480 = vmatpush.xpose.msra.mxu0 %v1450
        %1481 = vmatpush.xpose.msra.mxu0 %v1447
        %1482 = vmatpush.xpose.msra.mxu0 %v1444
        %1483 = vmatpush.xpose.msra.mxu0 %v1441
        %1484 = vmatpush.xpose.msra.mxu0 %v1438
        %1485 = vmatpush.xpose.msra.mxu0 %v1435
        %1486 = vmatpush.xpose.msra.mxu0 %v1432
        %1487 = vmatpush.xpose.msra.mxu0 %v1429
        %1488 = vmatpush.xpose.msra.mxu0 %v1426
        %1489 = vmatpush.xpose.msra.mxu0 %v1423
        %1490 = vmatpush.xpose.msra.mxu0 %v1420
        %1491 = vmatpush.xpose.msra.mxu0 %v1417
        %1492 = vmatpush.xpose.msra.mxu0 %v1414
        %1493 = vmatpush.xpose.msra.mxu0 %v1411
        %1494 = vmatmul.f32.gmra.mxu0 %v1360
        %v1495 = vpop.f32.mrf.mxu0
        %v1496 = vadd.f32 %v1358, %v1495
        %1497 = vdwg.mxu0
        %1499 = vset.pattern.permute.xlu0 0
        %1500 = vperm.xlu0 %1499, %v435
        %v1501 = vpop.permute.xlu0 %1500
        %v1503 = vadd.f32 %v1476, %v1501
        %v1504 = vadd.f32 %v1496, %v1501
        %v1505 = vxor.u32 %v1503, 2147483648
        %v1506 = vxor.u32 %v1504, 2147483648
        %v1507 = vmul.f32 %v1505, 1.442695
        %v1508 = vpow.pop %v1507
        %v1509 = vmul.f32 %v1506, 1.442695
        %v1510 = vpow.pop %v1509
        %v1511 = vadd.f32 %v1508, 1.0
        %v1512 = vadd.f32 %v1510, 1.0
        %v1513 = vrcp.pop %v1511
        %v1514 = vmul.f32 %v1511, %v1513
        %v1515 = vsub.f32 1.0, %v1514
        %v1516 = vmul.f32 %v1513, %v1515
        %v1517 = vadd.f32 %v1513, %v1516
        %vm1518 = vweird.f32 %v1511
        %vm1519 = vweird.f32 %v1513
        %vm1520 = vmor %vm1518, %vm1519
        %v1521 = vsel %vm1520, %v1513, %v1517
        %v1522 = vand.u32 2147483647, %v1511
        %vm1523 = vcmp.eq.f32.partialorder %v1522, 8.507059e+37
        %v1524 = vand.u32 %v1511, 2147483648
        %v1525 = vor.u32 1.1754944e-38, %v1524
        %v1526 = vsel %vm1523, %v1525, %v1521
        %v1527 = vmul.f32 1.0, %v1526
        %v1528 = vrcp.pop %v1512
        %v1529 = vmul.f32 %v1512, %v1528
        %v1530 = vsub.f32 1.0, %v1529
        %v1531 = vmul.f32 %v1528, %v1530
        %v1532 = vadd.f32 %v1528, %v1531
        %vm1533 = vweird.f32 %v1512
        %vm1534 = vweird.f32 %v1528
        %vm1535 = vmor %vm1533, %vm1534
        %v1536 = vsel %vm1535, %v1528, %v1532
        %v1537 = vand.u32 2147483647, %v1512
        %vm1538 = vcmp.eq.f32.partialorder %v1537, 8.507059e+37
        %v1539 = vand.u32 %v1512, 2147483648
        %v1540 = vor.u32 1.1754944e-38, %v1539
        %v1541 = vsel %vm1538, %v1540, %v1536
        %v1542 = vmul.f32 1.0, %v1541
        %v1545 = vrot.slane %v1542, 7
        %vm1546 = vcmask 1040384
        %v1547 = vsel %vm1546, %v1527, %v1545
        %v1549 = vlaneseq
        %vm1550 = vcmp.ge.s32.totalorder %v1549, 0
        %vm1551 = vcmp.lt.s32.totalorder %v1549, 256
        %vm1552 = vmand %vm1550, %vm1551
        %1553 = vst.msk [vmem:[%s342] sm:$0x3] %vm1552, %v1547
        %s1554 = sand.u32 %s230, 1
        %s1555 = scalar_lea.sflag [#allocation3], %s1554
        %s1556 = sand.u32 %s230, 1
        %s1557 = smul.addr %s1556, 2
        %s1558 = scalar_lea.vmem [#allocation2], %s1557
        // Predicated region
        $region57: #{neucf_forward.1} parent=55 // pred_check
          %p1559 = pneg %p240
        $region58: #{neucf_forward.1} parent=55 // pred_check_branch
          %1561 = sbr.rel (%p1559) target = $region60
        $region59: #{neucf_forward.1} parent=55 // pred_region
          %1563 = vsyncadd %s1555, 0
          %s1564 = smul.addr %s23, 2
          %s1565 = scalar_lea.hbm %s9, %s1564
          %s1567 = sshll.u32 %s1558, 4
          %s1568 = int_to_ptr.vmem [resolvable:$true] %s1567
          %s1569 = sshll.u32 %s1565, 4
          %s1570 = int_to_ptr.hbm [resolvable:$true] %s1569
          %1572 = dma.vmem_to_hbm [thread:$0]  %s1568, 32, %s1570, %s1555
        $region60: #{neucf_forward.1} parent=55 // pred_fallthru
          _
      $region56: #{neucf_forward.1} parent=5 // pred_fallthru
        _
      %p1573 = scmp.le.s32.totalorder 2, %s18
      // Predicated region
      $region61: #{neucf_forward.1} parent=5 // pred_check
        %p1574 = pneg %p1573
      $region62: #{neucf_forward.1} parent=5 // pred_check_branch
        %1576 = sbr.rel (%p1574) target = $region64
      $region63: #{neucf_forward.1} parent=5 // pred_region
        %s1577 = ssub.s32 %s18, 2
        // Predicated region
        $region65: #{neucf_forward.1} parent=63 // pred_check
          %p1578 = pneg %p246
        $region66: #{neucf_forward.1} parent=63 // pred_check_branch
          %1580 = sbr.rel (%p1578) target = $region68
        $region67: #{neucf_forward.1} parent=63 // pred_region
          %s1581 = sand.u32 %s231, 1
          %s1582 = scalar_lea.sflag [#allocation3], %s1581
          %s1583 = sand.u32 %s231, 1
          %s1584 = smul.addr %s1583, 2
          %s1585 = scalar_lea.vmem [#allocation2], %s1584
          %1587 = dma.done %s1582, 32
        $region68: #{neucf_forward.1} parent=63 // pred_fallthru
          _
      $region64: #{neucf_forward.1} parent=5 // pred_fallthru
        _
    $region6: #{neucf_forward.1} parent=1 // loop_footer
      %s22 = sadd.s32 1, %s18
    $region7: #{neucf_forward.1} parent=1 // loop_footer_branch
      %17 = sbr.rel target = $region3
    $region8: #{neucf_forward.1} parent=1 // loop_exit
      _
    %1588 = vsyncpa [#allocation3], 1
    %s1589 = scalar_lea.sflag [#allocation3], 1
    %1590 = vsyncpa %s1589, 1

</llo_original>
